<compile_context>
chip_gen: v7x
topology: tpu7x:2x2x1
jax: 0.10.0
libtpu: 0.0.40
codegen_flags: <defaults>
</compile_context>

<pallas_src>
import math

import jax
import jax.numpy as jnp
from jax.experimental import pallas as pl
from jax.experimental.pallas import tpu as pltpu


def _round_up(x, m):
    return (x + m - 1) // m * m


def _hypernet_kernel(m_ref, x_ref, w1_ref, b1_ref, w2_ref, b2_ref, o_ref):
    """o = x + (relu(x @ W1 + b1) @ W2 + b2) * m  for one (tm, dim_p) row tile."""
    x = x_ref[...]                                            # (tm, dim_p) f32
    # Linear 1 on the MXU: bf16 inputs, f32 accumulation.
    h = jnp.dot(x.astype(jnp.bfloat16), w1_ref[...],
                preferred_element_type=jnp.float32)
    # Bias + ReLU, then materialize the intermediate directly as bf16 so the
    # (tm, hid_p) buffer is never stored/spilled as f32.
    h = jnp.maximum(h + b1_ref[...], 0.0).astype(jnp.bfloat16)
    # Linear 2 on the MXU.
    y = jnp.dot(h, w2_ref[...], preferred_element_type=jnp.float32)
    y = y + b2_ref[...]
    # Residual + runtime multiplier (SMEM scalar -> no recompile per value).
    o_ref[...] = (x + y * m_ref[0, 0]).astype(o_ref.dtype)


def prepare_hypernet_params(w1, b1, w2, b2):
    """One-time prep: pad feature dims to 128 lanes and cast weights to bf16.

    Hoisted out of the per-call path so each forward only streams activations;
    the kernel-ready weight layout is created (and lives in HBM) once.
    Weights are stored as (in_features, out_features).
    """
    dim, hidden = w1.shape
    dim_p = _round_up(dim, 128)
    hid_p = _round_up(hidden, 128)
    w1_p = jnp.pad(jnp.asarray(w1, jnp.float32),
                   ((0, dim_p - dim), (0, hid_p - hidden))).astype(jnp.bfloat16)
    w2_p = jnp.pad(jnp.asarray(w2, jnp.float32),
                   ((0, hid_p - hidden), (0, dim_p - dim))).astype(jnp.bfloat16)
    b1_p = jnp.pad(jnp.asarray(b1, jnp.float32),
                   (0, hid_p - hidden)).reshape(1, hid_p)
    b2_p = jnp.pad(jnp.asarray(b2, jnp.float32),
                   (0, dim_p - dim)).reshape(1, dim_p)
    return {"w1": w1_p, "b1": b1_p, "w2": w2_p, "b2": b2_p}


def _pick_tm(n_rows, max_tm):
    """Row tile: multiple of 128; give >=2 grid steps when N allows so both v7x
    TensorCores get work, capped at max_tm for v5e/v6e large-N throughput."""
    if n_rows > max_tm:
        return max_tm
    half = _round_up(max(pl.cdiv(n_rows, 2), 1), 128)
    return max(128, min(max_tm, half))


def hypernetwork_forward(x, params, multiplier=1.0, *, max_tm=512):
    """x: (..., dim) float32; params from prepare_hypernet_params.

    Computes x + (relu(x @ W1 + b1) @ W2 + b2) * multiplier.
    """
    w1_p, b1_p, w2_p, b2_p = params["w1"], params["b1"], params["w2"], params["b2"]
    dim_p, hid_p = w1_p.shape
    orig_shape = x.shape
    dim = x.shape[-1]
    N = math.prod(x.shape[:-1])

    x2d = x.reshape(N, dim)
    if dim_p != dim:
        # Only pad the feature (lane) axis when dim is not 128-aligned.
        x2d = jnp.pad(x2d, ((0, 0), (0, dim_p - dim)))

    tm = _pick_tm(N, max_tm)
    # Ragged last row tile: Pallas drops OOB writes and the garbage OOB reads
    # only affect those dropped rows (every op here is row-independent).
    grid = (pl.cdiv(N, tm),)

    m_arr = jnp.asarray(multiplier, jnp.float32).reshape(1, 1)

    # VMEM budget: resident bf16 weights + f32 biases + double-buffered x/out
    # tiles + intermediate h (f32 pre-activation + bf16 copy) + headroom,
    # capped below v7x's 64 MiB physical VMEM.
    weight_bytes = 2 * dim_p * hid_p * 2
    bias_bytes = (hid_p + dim_p) * 4
    tile_bytes = 2 * 2 * tm * dim_p * 4
    h_bytes = tm * hid_p * (4 + 2)
    vmem_limit = min(48 * 1024 * 1024,
                     max(16 * 1024 * 1024,
                         weight_bytes + bias_bytes + tile_bytes + h_bytes
                         + 8 * 1024 * 1024))

    flops = 4 * N * dim_p * hid_p                     # two matmuls, 2*M*K*N each
    bytes_accessed = (2 * N * dim_p * 4               # x in + out (f32)
                      + weight_bytes + bias_bytes + 4)

    out = pl.pallas_call(
        _hypernet_kernel,
        out_shape=jax.ShapeDtypeStruct((N, dim_p), x.dtype),
        grid=grid,
        in_specs=[
            pl.BlockSpec(memory_space=pltpu.MemorySpace.SMEM),    # multiplier (1,1)
            pl.BlockSpec((tm, dim_p), lambda i: (i, 0)),          # x row tile (pipelined)
            pl.BlockSpec(memory_space=pltpu.MemorySpace.VMEM),    # W1: resident bf16
            pl.BlockSpec(memory_space=pltpu.MemorySpace.VMEM),    # b1
            pl.BlockSpec(memory_space=pltpu.MemorySpace.VMEM),    # W2: resident bf16
            pl.BlockSpec(memory_space=pltpu.MemorySpace.VMEM),    # b2
        ],
        out_specs=pl.BlockSpec((tm, dim_p), lambda i: (i, 0)),
        compiler_params=pltpu.CompilerParams(
            dimension_semantics=("parallel",),
            vmem_limit_bytes=vmem_limit,
        ),
        cost_estimate=pl.CostEstimate(
            flops=flops, transcendentals=0, bytes_accessed=bytes_accessed),
    )(m_arr, x2d, w1_p, b1_p, w2_p, b2_p)

    if dim_p != dim:
        out = out[:, :dim]
    return out.reshape(orig_shape)


def init_params(key, dim, normal_std=0.01):
    """Mirrors init_weight('Normal'): W ~ N(0, std), b ~ N(0, 0) == zeros."""
    hidden = 2 * dim                                  # layer_structure [1, 2, 1]
    k1, k2 = jax.random.split(key)
    w1 = jax.random.normal(k1, (dim, hidden), jnp.float32) * normal_std
    b1 = jnp.zeros((hidden,), jnp.float32)
    w2 = jax.random.normal(k2, (hidden, dim), jnp.float32) * normal_std
    b2 = jnp.zeros((dim,), jnp.float32)
    return w1, b1, w2, b2


def _reference_f32(x, w1, b1, w2, b2, m):
    h = jnp.maximum(x @ w1 + b1, 0.0)
    return x + (h @ w2 + b2) * m


def _reference_bf16(x, w1, b1, w2, b2, m):
    h = jnp.dot(x.astype(jnp.bfloat16), w1.astype(jnp.bfloat16),
                preferred_element_type=jnp.float32) + b1
    h = jnp.maximum(h, 0.0)
    y = jnp.dot(h.astype(jnp.bfloat16), w2.astype(jnp.bfloat16),
                preferred_element_type=jnp.float32) + b2
    return x + y * m


if __name__ == "__main__":
    # Small but lane-aligned demo: dim=128, rows = 4*77 = 308 (not a multiple of
    # the row tile, to exercise the ragged last grid step; also yields 2 grid
    # steps so both v7x TensorCores get work).
    batch, seq, dim = 4, 77, 128
    key = jax.random.PRNGKey(0)
    kx, kp = jax.random.split(key)

    x = jax.random.normal(kx, (batch, seq, dim), jnp.float32)
    w1, b1, w2, b2 = init_params(kp, dim, normal_std=0.01)
    multiplier = 1.0   # HypernetworkModule.multiplier (runtime value, not baked in)

    # One-time weight prep (pad + bf16 cast) hoisted out of the per-call path.
    params = jax.tree_util.tree_map(jax.block_until_ready,
                                    prepare_hypernet_params(w1, b1, w2, b2))

    fwd = jax.jit(hypernetwork_forward)
    out = jax.block_until_ready(fwd(x, params, multiplier))

    ref_bf16 = _reference_bf16(x, w1, b1, w2, b2, multiplier)
    ref_f32 = _reference_f32(x, w1, b1, w2, b2, multiplier)

    assert out.shape == x.shape and out.dtype == x.dtype
    assert jnp.allclose(out, ref_bf16, atol=1e-3, rtol=1e-3), "mismatch vs bf16-matched ref"
    assert jnp.allclose(out, ref_f32, atol=5e-2, rtol=5e-2), "mismatch vs f32 ref"

    # Different multiplier value must not require a recompile (runtime scalar).
    out2 = jax.block_until_ready(fwd(x, params, 0.5))
    assert jnp.allclose(out2, _reference_f32(x, w1, b1, w2, b2, 0.5),
                        atol=5e-2, rtol=5e-2), "mismatch at multiplier=0.5"

    print("KERNEL_OK")
</pallas_src>

<mosaic_0001>
module attributes {stable_mosaic.version = 11 : i64} {
  func.func @_hypernet_kernel(%arg0: i32, %arg1: memref<1x1xf32, #tpu.memory_space<smem>>, %arg2: memref<256x128xf32, #tpu.memory_space<vmem>>, %arg3: memref<128x256xbf16, #tpu.memory_space<vmem>>, %arg4: memref<1x256xf32, #tpu.memory_space<vmem>>, %arg5: memref<256x128xbf16, #tpu.memory_space<vmem>>, %arg6: memref<1x128xf32, #tpu.memory_space<vmem>>, %arg7: memref<256x128xf32, #tpu.memory_space<vmem>>) attributes {dimension_semantics = [#tpu.dimension_semantics<parallel>], iteration_bounds = array<i64: 2>, scalar_prefetch = 0 : i64, scratch_operands = 0 : i64, tpu.core_type = #tpu.core_type<tc>, window_params = [{transform_indices = @transform_0, window_bounds = array<i64: 1, 1>}, {transform_indices = @transform_1, window_bounds = array<i64: 256, 128>}, {pipeline_mode = #tpu.pipeline_mode<synchronous>, transform_indices = @transform_2, window_bounds = array<i64: 128, 256>}, {pipeline_mode = #tpu.pipeline_mode<synchronous>, transform_indices = @transform_3, window_bounds = array<i64: 1, 256>}, {pipeline_mode = #tpu.pipeline_mode<synchronous>, transform_indices = @transform_4, window_bounds = array<i64: 256, 128>}, {pipeline_mode = #tpu.pipeline_mode<synchronous>, transform_indices = @transform_5, window_bounds = array<i64: 1, 128>}, {transform_indices = @transform_6, window_bounds = array<i64: 256, 128>}]} {
    %c0 = arith.constant 0 : index
    %c0_0 = arith.constant 0 : index
    %0 = vector.load %arg2[%c0, %c0_0] : memref<256x128xf32, #tpu.memory_space<vmem>>, vector<256x128xf32>
    %1 = arith.truncf %0 : vector<256x128xf32> to vector<256x128xbf16>
    %c0_1 = arith.constant 0 : index
    %c0_2 = arith.constant 0 : index
    %2 = vector.load %arg3[%c0_1, %c0_2] : memref<128x256xbf16, #tpu.memory_space<vmem>>, vector<128x256xbf16>
    %cst = arith.constant dense<0.000000e+00> : vector<256x256xf32>
    %3 = tpu.matmul %1, %2, %cst {dimension_numbers = #tpu.dot_dimension_numbers<[1], [0], [0], [1], [0, 0, 1, 1], [], []>} : vector<256x128xbf16>, vector<128x256xbf16>, vector<256x256xf32> -> vector<256x256xf32>
    %c0_3 = arith.constant 0 : index
    %c0_4 = arith.constant 0 : index
    %4 = vector.load %arg4[%c0_3, %c0_4] : memref<1x256xf32, #tpu.memory_space<vmem>>, vector<1x256xf32>
    %5 = vector.broadcast %4 : vector<1x256xf32> to vector<256x256xf32>
    %6 = arith.addf %3, %5 : vector<256x256xf32>
    %cst_5 = arith.constant 0.000000e+00 : f32
    %7 = vector.broadcast %cst_5 : f32 to vector<256x256xf32>
    %8 = arith.maximumf %6, %7 : vector<256x256xf32>
    %9 = arith.truncf %8 : vector<256x256xf32> to vector<256x256xbf16>
    %c0_6 = arith.constant 0 : index
    %c0_7 = arith.constant 0 : index
    %10 = vector.load %arg5[%c0_6, %c0_7] : memref<256x128xbf16, #tpu.memory_space<vmem>>, vector<256x128xbf16>
    %cst_8 = arith.constant dense<0.000000e+00> : vector<256x128xf32>
    %11 = tpu.matmul %9, %10, %cst_8 {dimension_numbers = #tpu.dot_dimension_numbers<[1], [0], [0], [1], [0, 0, 1, 1], [], []>} : vector<256x256xbf16>, vector<256x128xbf16>, vector<256x128xf32> -> vector<256x128xf32>
    %c0_9 = arith.constant 0 : index
    %c0_10 = arith.constant 0 : index
    %12 = vector.load %arg6[%c0_9, %c0_10] : memref<1x128xf32, #tpu.memory_space<vmem>>, vector<1x128xf32>
    %13 = vector.broadcast %12 : vector<1x128xf32> to vector<256x128xf32>
    %14 = arith.addf %11, %13 : vector<256x128xf32>
    %c0_11 = arith.constant 0 : index
    %c0_12 = arith.constant 0 : index
    %15 = memref.load %arg1[%c0_11, %c0_12] : memref<1x1xf32, #tpu.memory_space<smem>>
    %16 = vector.broadcast %15 : f32 to vector<256x128xf32>
    %17 = arith.mulf %14, %16 : vector<256x128xf32>
    %18 = arith.addf %0, %17 : vector<256x128xf32>
    %c0_13 = arith.constant 0 : index
    %c0_14 = arith.constant 0 : index
    %19 = vector.load %arg7[%c0_13, %c0_14] : memref<256x128xf32, #tpu.memory_space<vmem>>, vector<256x128xf32>
    tpu.vector_store %arg7[%c0_13, %c0_14], %18 {strides = array<i32>} : memref<256x128xf32, #tpu.memory_space<vmem>>, vector<256x128xf32>,
    return
  }
  func.func @transform_0(%arg0: i32) -> (i32, i32) {
    %c0_i32 = arith.constant 0 : i32
    %c0_i32_0 = arith.constant 0 : i32
    %c0_i32_1 = arith.constant 0 : i32
    return %c0_i32, %c0_i32_0 : i32, i32
  }
  func.func @transform_1(%arg0: i32) -> (i32, i32) {
    %c0_i32 = arith.constant 0 : i32
    %c0_i32_0 = arith.constant 0 : i32
    return %arg0, %c0_i32 : i32, i32
  }
  func.func @transform_2(%arg0: i32) -> (i32, i32) {
    %c0_i32 = arith.constant 0 : i32
    %c0_i32_0 = arith.constant 0 : i32
    %c0_i32_1 = arith.constant 0 : i32
    return %c0_i32, %c0_i32_0 : i32, i32
  }
  func.func @transform_3(%arg0: i32) -> (i32, i32) {
    %c0_i32 = arith.constant 0 : i32
    %c0_i32_0 = arith.constant 0 : i32
    %c0_i32_1 = arith.constant 0 : i32
    return %c0_i32, %c0_i32_0 : i32, i32
  }
  func.func @transform_4(%arg0: i32) -> (i32, i32) {
    %c0_i32 = arith.constant 0 : i32
    %c0_i32_0 = arith.constant 0 : i32
    %c0_i32_1 = arith.constant 0 : i32
    return %c0_i32, %c0_i32_0 : i32, i32
  }
  func.func @transform_5(%arg0: i32) -> (i32, i32) {
    %c0_i32 = arith.constant 0 : i32
    %c0_i32_0 = arith.constant 0 : i32
    %c0_i32_1 = arith.constant 0 : i32
    return %c0_i32, %c0_i32_0 : i32, i32
  }
  func.func @transform_6(%arg0: i32) -> (i32, i32) {
    %c0_i32 = arith.constant 0 : i32
    %c0_i32_0 = arith.constant 0 : i32
    return %arg0, %c0_i32 : i32, i32
  }
}

</mosaic_0001>

<llo_original>
// kernel: hypernetwork_forward.1
$region0: #{hypernetwork_forward.1}
  #allocation0 [shape = 'u32[]', space=smem, size = 0x4, offset = 0x4, fixed_abs, tag = 'smem constant byte address 0x4 - core index']
  #allocation1 [shape = 'u32[144,128]{1,0:T(1,128)}', space=vmem, size = 0x12000, scoped, tag = 'internal scratch']
  #allocation2 [shape = 'f32[1,1]{1,0:T(1,128)S(6)}', space=smem, size = 0x200, scoped, tag = 'scoped memory for hypernetwork_forward.1']
  %s0 = inlined_call_operand.<no memory space> [shape: f32[1,1], index: 0, kind: input, shape index: {}]
  %s1 = inlined_call_operand.vmem [shape: f32[308,128], index: 1, kind: input, shape index: {}]
  %s2 = inlined_call_operand.vmem [shape: bf16[128,256], index: 2, kind: input, shape index: {}]
  %s3 = inlined_call_operand.vmem [shape: f32[1,256], index: 3, kind: input, shape index: {}]
  %s4 = inlined_call_operand.vmem [shape: bf16[256,128], index: 4, kind: input, shape index: {}]
  %s5 = inlined_call_operand.vmem [shape: f32[1,128], index: 5, kind: input, shape index: {}]
  %s6 = inlined_call_operand.vmem [shape: f32[308,128], index: 6, kind: output, shape index: {}]
  %s7 = sld [smem:[#allocation0]]
  $region105: #{hypernetwork_forward.1} parent=0
    _
  %s9 = ssub.s32 1, %s7
  %s10 = scalar_select 0, %s9, %s7
  %11 = sst [smem:[#allocation2]] %s0
  $region1: #{hypernetwork_forward.1} parent=0
    #allocation3 [shape = 'u8[262144]{0}', space=vmem, size = 0x40000, scoped, tag = 'output window, operand 0']
    loop: start=0, step=1, limit=4
    $region2: #{hypernetwork_forward.1} parent=1 // loop_pre_header
      _
    $region3: #{hypernetwork_forward.1} parent=1 // loop_header
      %s13 = sphi 0, %s17
      %p14 = scmp.ge.s32.totalorder %s13, 4
      %s21 = sphi 0, %s21
      %s23 = sphi 0, %s21
      %s24 = sphi 0, %s23
      %s38 = sphi 0, %s24
      %s44 = sphi 0, %s46
      %s47 = sphi 0, %s44
      %s48 = sphi 0, %s47
      %s64 = sphi 0, %s48
      %s68 = sphi 0, %s68
      %s70 = sphi 0, %s68
      %s71 = sphi 0, %s70
      %s85 = sphi 0, %s71
      %s89 = sphi 0, %s89
      %s91 = sphi 0, %s89
      %s92 = sphi 0, %s91
      %s106 = sphi 0, %s92
      %s110 = sphi 0, %s110
      %s112 = sphi 0, %s110
      %s113 = sphi 0, %s112
      %s127 = sphi 0, %s113
      %s131 = sphi 0, %s131
      %s133 = sphi 0, %s131
      %s134 = sphi 0, %s133
      %s148 = sphi 0, %s134
      %s154 = sphi 0, %s156
      %s157 = sphi 0, %s154
      %s158 = sphi 0, %s157
      %s174 = sphi 0, %s158
    $region4: #{hypernetwork_forward.1} parent=1 // loop_header_branch
      %16 = sbr.rel (%p14) target = $region8
    $region5: #{hypernetwork_forward.1} parent=1 // loop_body
      %s18 = ssub.s32 %s13, 1
      %s19 = ssub.s32 %s13, 2
      %s20 = sadd.s32 %s13, 1
      %s22 = sadd.s32 %s21, 1
      %p25 = scmp.eq.s32.totalorder %s13, 1
      %p26 = scmp.ne.s32.totalorder %s21, %s23
      %p27 = scmp.eq.s32.totalorder %s13, 0
      %p28 = por %p26, %p27
      %p29 = scmp.ne.s32.totalorder %s21, %s23
      %p30 = scmp.eq.s32.totalorder %s18, 1
      %p31 = por %p29, %p30
      %p32 = scmp.ne.s32.totalorder %s23, %s24
      %p33 = scmp.eq.s32.totalorder %s18, 0
      %p34 = por %p32, %p33
      %p35 = scmp.ne.s32.totalorder %s23, %s24
      %p36 = scmp.eq.s32.totalorder %s19, 1
      %p37 = por %p35, %p36
      %p39 = scmp.ne.s32.totalorder %s24, %s38
      %p40 = scmp.eq.s32.totalorder %s19, 0
      %p41 = por %p39, %p40
      %s42 = ssub.s32 %s13, %s20
      %p43 = scmp.eq.s32.totalorder %s42, 0
      %s45 = sadd.s32 %s44, 1
      %s46 = scalar_select %p43, %s44, %s45
      %p49 = pneg %p43
      %p50 = scmp.eq.s32.totalorder %s13, 1
      %p51 = por %p49, %p50
      %p52 = scmp.ne.s32.totalorder %s44, %s47
      %p53 = scmp.eq.s32.totalorder %s13, 0
      %p54 = por %p52, %p53
      %p55 = scmp.ne.s32.totalorder %s44, %s47
      %p56 = scmp.eq.s32.totalorder %s18, 1
      %p57 = por %p55, %p56
      %p58 = scmp.ne.s32.totalorder %s47, %s48
      %p59 = scmp.eq.s32.totalorder %s18, 0
      %p60 = por %p58, %p59
      %p61 = scmp.ne.s32.totalorder %s47, %s48
      %p62 = scmp.eq.s32.totalorder %s19, 1
      %p63 = por %p61, %p62
      %p65 = scmp.ne.s32.totalorder %s48, %s64
      %p66 = scmp.eq.s32.totalorder %s19, 0
      %p67 = por %p65, %p66
      %s69 = sadd.s32 %s68, 1
      %p72 = scmp.eq.s32.totalorder %s13, 1
      %p73 = scmp.ne.s32.totalorder %s68, %s70
      %p74 = scmp.eq.s32.totalorder %s13, 0
      %p75 = por %p73, %p74
      %p76 = scmp.ne.s32.totalorder %s68, %s70
      %p77 = scmp.eq.s32.totalorder %s18, 1
      %p78 = por %p76, %p77
      %p79 = scmp.ne.s32.totalorder %s70, %s71
      %p80 = scmp.eq.s32.totalorder %s18, 0
      %p81 = por %p79, %p80
      %p82 = scmp.ne.s32.totalorder %s70, %s71
      %p83 = scmp.eq.s32.totalorder %s19, 1
      %p84 = por %p82, %p83
      %p86 = scmp.ne.s32.totalorder %s71, %s85
      %p87 = scmp.eq.s32.totalorder %s19, 0
      %p88 = por %p86, %p87
      %s90 = sadd.s32 %s89, 1
      %p93 = scmp.eq.s32.totalorder %s13, 1
      %p94 = scmp.ne.s32.totalorder %s89, %s91
      %p95 = scmp.eq.s32.totalorder %s13, 0
      %p96 = por %p94, %p95
      %p97 = scmp.ne.s32.totalorder %s89, %s91
      %p98 = scmp.eq.s32.totalorder %s18, 1
      %p99 = por %p97, %p98
      %p100 = scmp.ne.s32.totalorder %s91, %s92
      %p101 = scmp.eq.s32.totalorder %s18, 0
      %p102 = por %p100, %p101
      %p103 = scmp.ne.s32.totalorder %s91, %s92
      %p104 = scmp.eq.s32.totalorder %s19, 1
      %p105 = por %p103, %p104
      %p107 = scmp.ne.s32.totalorder %s92, %s106
      %p108 = scmp.eq.s32.totalorder %s19, 0
      %p109 = por %p107, %p108
      %s111 = sadd.s32 %s110, 1
      %p114 = scmp.eq.s32.totalorder %s13, 1
      %p115 = scmp.ne.s32.totalorder %s110, %s112
      %p116 = scmp.eq.s32.totalorder %s13, 0
      %p117 = por %p115, %p116
      %p118 = scmp.ne.s32.totalorder %s110, %s112
      %p119 = scmp.eq.s32.totalorder %s18, 1
      %p120 = por %p118, %p119
      %p121 = scmp.ne.s32.totalorder %s112, %s113
      %p122 = scmp.eq.s32.totalorder %s18, 0
      %p123 = por %p121, %p122
      %p124 = scmp.ne.s32.totalorder %s112, %s113
      %p125 = scmp.eq.s32.totalorder %s19, 1
      %p126 = por %p124, %p125
      %p128 = scmp.ne.s32.totalorder %s113, %s127
      %p129 = scmp.eq.s32.totalorder %s19, 0
      %p130 = por %p128, %p129
      %s132 = sadd.s32 %s131, 1
      %p135 = scmp.eq.s32.totalorder %s13, 1
      %p136 = scmp.ne.s32.totalorder %s131, %s133
      %p137 = scmp.eq.s32.totalorder %s13, 0
      %p138 = por %p136, %p137
      %p139 = scmp.ne.s32.totalorder %s131, %s133
      %p140 = scmp.eq.s32.totalorder %s18, 1
      %p141 = por %p139, %p140
      %p142 = scmp.ne.s32.totalorder %s133, %s134
      %p143 = scmp.eq.s32.totalorder %s18, 0
      %p144 = por %p142, %p143
      %p145 = scmp.ne.s32.totalorder %s133, %s134
      %p146 = scmp.eq.s32.totalorder %s19, 1
      %p147 = por %p145, %p146
      %p149 = scmp.ne.s32.totalorder %s134, %s148
      %p150 = scmp.eq.s32.totalorder %s19, 0
      %p151 = por %p149, %p150
      %s152 = ssub.s32 %s13, %s20
      %p153 = scmp.eq.s32.totalorder %s152, 0
      %s155 = sadd.s32 %s154, 1
      %s156 = scalar_select %p153, %s154, %s155
      %p159 = pneg %p153
      %p160 = scmp.eq.s32.totalorder %s13, 1
      %p161 = por %p159, %p160
      %p162 = scmp.ne.s32.totalorder %s154, %s157
      %p163 = scmp.eq.s32.totalorder %s13, 0
      %p164 = por %p162, %p163
      %p165 = scmp.ne.s32.totalorder %s154, %s157
      %p166 = scmp.eq.s32.totalorder %s18, 1
      %p167 = por %p165, %p166
      %p168 = scmp.ne.s32.totalorder %s157, %s158
      %p169 = scmp.eq.s32.totalorder %s18, 0
      %p170 = por %p168, %p169
      %p171 = scmp.ne.s32.totalorder %s157, %s158
      %p172 = scmp.eq.s32.totalorder %s19, 1
      %p173 = por %p171, %p172
      %p175 = scmp.ne.s32.totalorder %s158, %s174
      %p176 = scmp.eq.s32.totalorder %s19, 0
      %p177 = por %p175, %p176
      %p178 = scmp.le.s32.totalorder 1, %s13
      %p179 = scmp.lt.s32.totalorder %s13, 3
      %p180 = pnand %p178, %p179
      %p181 = pneg %p180
      // Predicated region
      $region9: #{hypernetwork_forward.1} parent=5 // pred_check
        _
      $region10: #{hypernetwork_forward.1} parent=5 // pred_check_branch
        %183 = sbr.rel (%p180) target = $region12
      $region11: #{hypernetwork_forward.1} parent=5 // pred_region
        %s184 = ssub.s32 %s13, 1
        // Predicated region
        $region13: #{hypernetwork_forward.1} parent=11 // pred_check
          %p185 = pneg %p34
        $region14: #{hypernetwork_forward.1} parent=11 // pred_check_branch
          %187 = sbr.rel (%p185) target = $region16
        $region15: #{hypernetwork_forward.1} parent=11 // pred_region
          _
        $region16: #{hypernetwork_forward.1} parent=11 // pred_fallthru
          _
        // Predicated region
        $region17: #{hypernetwork_forward.1} parent=11 // pred_check
          %p188 = pneg %p81
        $region18: #{hypernetwork_forward.1} parent=11 // pred_check_branch
          %190 = sbr.rel (%p188) target = $region20
        $region19: #{hypernetwork_forward.1} parent=11 // pred_region
          _
        $region20: #{hypernetwork_forward.1} parent=11 // pred_fallthru
          _
        // Predicated region
        $region21: #{hypernetwork_forward.1} parent=11 // pred_check
          %p191 = pneg %p102
        $region22: #{hypernetwork_forward.1} parent=11 // pred_check_branch
          %193 = sbr.rel (%p191) target = $region24
        $region23: #{hypernetwork_forward.1} parent=11 // pred_region
          _
        $region24: #{hypernetwork_forward.1} parent=11 // pred_fallthru
          _
        // Predicated region
        $region25: #{hypernetwork_forward.1} parent=11 // pred_check
          %p194 = pneg %p123
        $region26: #{hypernetwork_forward.1} parent=11 // pred_check_branch
          %196 = sbr.rel (%p194) target = $region28
        $region27: #{hypernetwork_forward.1} parent=11 // pred_region
          _
        $region28: #{hypernetwork_forward.1} parent=11 // pred_fallthru
          _
        // Predicated region
        $region29: #{hypernetwork_forward.1} parent=11 // pred_check
          %p197 = pneg %p144
        $region30: #{hypernetwork_forward.1} parent=11 // pred_check_branch
          %199 = sbr.rel (%p197) target = $region32
        $region31: #{hypernetwork_forward.1} parent=11 // pred_region
          _
        $region32: #{hypernetwork_forward.1} parent=11 // pred_fallthru
          _
      $region12: #{hypernetwork_forward.1} parent=5 // pred_fallthru
        _
      %p200 = scmp.lt.s32.totalorder %s13, 2
      // Predicated region
      $region33: #{hypernetwork_forward.1} parent=5 // pred_check
        %p201 = pneg %p200
      $region34: #{hypernetwork_forward.1} parent=5 // pred_check_branch
        %203 = sbr.rel (%p201) target = $region36
      $region35: #{hypernetwork_forward.1} parent=5 // pred_region
        // Predicated region
        $region37: #{hypernetwork_forward.1} parent=35 // pred_check
          %p204 = pneg %p54
        $region38: #{hypernetwork_forward.1} parent=35 // pred_check_branch
          %206 = sbr.rel (%p204) target = $region40
        $region39: #{hypernetwork_forward.1} parent=35 // pred_region
          %s207 = smul.u32 32, %s13
          %s208 = ssub.s32 39, %s207
          %p209 = scmp.lt.s32.totalorder %s208, 32
          %s210 = scalar_select %p209, %s208, 32
          %s211 = smul.u32 128, %s210
          %p212 = scmp.lt.s32.totalorder %s207, 38
          %s213 = scalar_select %p212, %s207, 38
          %s214 = smul.addr %s213, 8
          %s215 = scalar_lea.vmem %s1, %s214
          %s216 = smul.u32 32, %s13
          %s217 = ssub.s32 39, %s216
          %p218 = scmp.lt.s32.totalorder %s217, 32
          %s219 = scalar_select %p218, %s217, 32
          %s220 = smul.u32 128, %s219
        $region40: #{hypernetwork_forward.1} parent=35 // pred_fallthru
          _
      $region36: #{hypernetwork_forward.1} parent=5 // pred_fallthru
        _
      %p221 = scmp.le.s32.totalorder 1, %s13
      %p222 = scmp.lt.s32.totalorder %s13, 3
      %p223 = pnand %p221, %p222
      %p224 = pneg %p223
      // Predicated region
      $region41: #{hypernetwork_forward.1} parent=5 // pred_check
        _
      $region42: #{hypernetwork_forward.1} parent=5 // pred_check_branch
        %226 = sbr.rel (%p223) target = $region44
      $region43: #{hypernetwork_forward.1} parent=5 // pred_region
        %s227 = ssub.s32 %s13, 1
        %p228 = pneg %p34
        %p229 = pneg %p31
        %s230 = smul.u32 32, %s18
        %s231 = ssub.s32 39, %s230
        %p232 = scmp.lt.s32.totalorder %s231, 32
        %s233 = scalar_select %p232, %s231, 32
        %s234 = smul.u32 128, %s233
        %p235 = scmp.lt.s32.totalorder %s230, 38
        %s236 = scalar_select %p235, %s230, 38
        %s237 = smul.addr %s236, 8
        %s238 = scalar_lea.vmem %s1, %s237
        %p239 = pneg %p60
        %p240 = pneg %p57
        %p241 = pneg %p81
        %p242 = pneg %p78
        %p243 = pneg %p102
        %p244 = pneg %p99
        %p245 = pneg %p123
        %p246 = pneg %p120
        %p247 = pneg %p144
        %p248 = pneg %p141
        %p249 = pneg %p170
        %p250 = pneg %p167
        %s251 = sand.u32 %s157, 1
        %s252 = sand.u32 %s157, 1
        %s253 = smul.addr %s252, 256
        %s254 = scalar_lea.vmem [#allocation3], %s253
        %s255 = smul.u32 32, %s18
        %s256 = ssub.s32 39, %s255
        %p257 = scmp.lt.s32.totalorder %s256, 32
        %s258 = scalar_select %p257, %s256, 32
        %s259 = smul.u32 128, %s258
        %p260 = scmp.lt.s32.totalorder %s255, 38
        %s261 = scalar_select %p260, %s255, 38
        %s262 = smul.addr %s261, 8
        %s263 = scalar_lea.vmem %s1, %s262
        %s264 = smul.u32 32, %s18
        %s265 = ssub.s32 39, %s264
        %p266 = scmp.lt.s32.totalorder %s265, 32
        %s267 = scalar_select %p266, %s265, 32
        %s268 = smul.u32 128, %s267
        %s269 = smul.u32 32, %s18
        %s270 = ssub.s32 39, %s269
        %p271 = scmp.lt.s32.totalorder %s270, 32
        %s272 = scalar_select %p271, %s270, 32
        %s273 = smul.u32 128, %s272
        %v275 = vld [vmem:[%s263] sm:$0xff]
        %v276 = vld [vmem:[%s263 + $0x8] sm:$0xff]
        %v277 = vld [vmem:[%s263 + $0x10] sm:$0xff]
        %v278 = vld [vmem:[%s263 + $0x18] sm:$0xff]
        %v279 = vld [vmem:[%s263 + $0x20] sm:$0xff]
        %v280 = vld [vmem:[%s263 + $0x28] sm:$0xff]
        %v281 = vld [vmem:[%s263 + $0x30] sm:$0xff]
        %v282 = vld [vmem:[%s263 + $0x38] sm:$0xff]
        %v283 = vld [vmem:[%s263 + $0x40] sm:$0xff]
        %v284 = vld [vmem:[%s263 + $0x48] sm:$0xff]
        %v285 = vld [vmem:[%s263 + $0x50] sm:$0xff]
        %v286 = vld [vmem:[%s263 + $0x58] sm:$0xff]
        %v287 = vld [vmem:[%s263 + $0x60] sm:$0xff]
        %v288 = vld [vmem:[%s263 + $0x68] sm:$0xff]
        %v289 = vld [vmem:[%s263 + $0x70] sm:$0xff]
        %v290 = vld [vmem:[%s263 + $0x78] sm:$0xff]
        %v291 = vld [vmem:[%s263 + $0x80] sm:$0xff]
        %v292 = vld [vmem:[%s263 + $0x88] sm:$0xff]
        %v293 = vld [vmem:[%s263 + $0x90] sm:$0xff]
        %v294 = vld [vmem:[%s263 + $0x98] sm:$0xff]
        %v295 = vld [vmem:[%s263 + $0xa0] sm:$0xff]
        %v296 = vld [vmem:[%s263 + $0xa8] sm:$0xff]
        %v297 = vld [vmem:[%s263 + $0xb0] sm:$0xff]
        %v298 = vld [vmem:[%s263 + $0xb8] sm:$0xff]
        %v299 = vld [vmem:[%s263 + $0xc0] sm:$0xff]
        %v300 = vld [vmem:[%s263 + $0xc8] sm:$0xff]
        %v301 = vld [vmem:[%s263 + $0xd0] sm:$0xff]
        %v302 = vld [vmem:[%s263 + $0xd8] sm:$0xff]
        %v303 = vld [vmem:[%s263 + $0xe0] sm:$0xff]
        %v304 = vld [vmem:[%s263 + $0xe8] sm:$0xff]
        %v305 = vld [vmem:[%s263 + $0xf0] sm:$0xff]
        %v306 = vld [vmem:[%s263 + $0xf8] sm:$0xff]
        %v307 = vpack.c.bf16 %v276, %v275
        %v308 = vpack.c.bf16 %v278, %v277
        %v309 = vpack.c.bf16 %v280, %v279
        %v310 = vpack.c.bf16 %v282, %v281
        %v311 = vpack.c.bf16 %v284, %v283
        %v312 = vpack.c.bf16 %v286, %v285
        %v313 = vpack.c.bf16 %v288, %v287
        %v314 = vpack.c.bf16 %v290, %v289
        %v315 = vpack.c.bf16 %v292, %v291
        %v316 = vpack.c.bf16 %v294, %v293
        %v317 = vpack.c.bf16 %v296, %v295
        %v318 = vpack.c.bf16 %v298, %v297
        %v319 = vpack.c.bf16 %v300, %v299
        %v320 = vpack.c.bf16 %v302, %v301
        %v321 = vpack.c.bf16 %v304, %v303
        %v322 = vpack.c.bf16 %v306, %v305
        %v323 = vld [vmem:[%s2] sm:$0xff]
        %v324 = vld [vmem:[%s2 + $0x8] sm:$0xff]
        %v325 = vld [vmem:[%s2 + $0x10] sm:$0xff]
        %v326 = vld [vmem:[%s2 + $0x18] sm:$0xff]
        %v327 = vld [vmem:[%s2 + $0x20] sm:$0xff]
        %v328 = vld [vmem:[%s2 + $0x28] sm:$0xff]
        %v329 = vld [vmem:[%s2 + $0x30] sm:$0xff]
        %v330 = vld [vmem:[%s2 + $0x38] sm:$0xff]
        %v331 = vld [vmem:[%s2 + $0x40] sm:$0xff]
        %v332 = vld [vmem:[%s2 + $0x48] sm:$0xff]
        %v333 = vld [vmem:[%s2 + $0x50] sm:$0xff]
        %v334 = vld [vmem:[%s2 + $0x58] sm:$0xff]
        %v335 = vld [vmem:[%s2 + $0x60] sm:$0xff]
        %v336 = vld [vmem:[%s2 + $0x68] sm:$0xff]
        %v337 = vld [vmem:[%s2 + $0x70] sm:$0xff]
        %v338 = vld [vmem:[%s2 + $0x78] sm:$0xff]
        %v339 = vld [vmem:[%s3] sm:$0x3]
        %v341 = vlaneseq
        %v342 = vshrl.u32 %v341, 7
        %v343 = vsub.s32 0, %v342
        %v344 = vrot.slane %v339, %v343
        %v345 = vlaneseq
        %v346 = vshrl.u32 %v345, 7
        %v347 = vsub.s32 1, %v346
        %v348 = vrot.slane %v339, %v347
        %v367 = vunpack.c.l.b16 %v323
        %v368 = vunpack.c.h.b16 %v323
        %v369 = vunpack.c.l.b16 %v324
        %v370 = vunpack.c.h.b16 %v324
        %v371 = vunpack.c.l.b16 %v325
        %v372 = vunpack.c.h.b16 %v325
        %v373 = vunpack.c.l.b16 %v326
        %v374 = vunpack.c.h.b16 %v326
        %v375 = vunpack.c.l.b16 %v327
        %v376 = vunpack.c.h.b16 %v327
        %v377 = vunpack.c.l.b16 %v328
        %v378 = vunpack.c.h.b16 %v328
        %v379 = vunpack.c.l.b16 %v329
        %v380 = vunpack.c.h.b16 %v329
        %v381 = vunpack.c.l.b16 %v330
        %v382 = vunpack.c.h.b16 %v330
        %v383 = vunpack.c.l.b16 %v331
        %v384 = vunpack.c.h.b16 %v331
        %v385 = vunpack.c.l.b16 %v332
        %v386 = vunpack.c.h.b16 %v332
        %v387 = vunpack.c.l.b16 %v333
        %v388 = vunpack.c.h.b16 %v333
        %v389 = vunpack.c.l.b16 %v334
        %v390 = vunpack.c.h.b16 %v334
        %v391 = vunpack.c.l.b16 %v335
        %v392 = vunpack.c.h.b16 %v335
        %v393 = vunpack.c.l.b16 %v336
        %v394 = vunpack.c.h.b16 %v336
        %v395 = vunpack.c.l.b16 %v337
        %v396 = vunpack.c.h.b16 %v337
        %v397 = vunpack.c.l.b16 %v338
        %v398 = vunpack.c.h.b16 %v338
        %v399 = vpack.c.b16 %v369, %v367
        %v400 = vpack.c.b16 %v370, %v368
        %v401 = vpack.c.b16 %v373, %v371
        %v402 = vpack.c.b16 %v374, %v372
        %v403 = vpack.c.b16 %v377, %v375
        %v404 = vpack.c.b16 %v378, %v376
        %v405 = vpack.c.b16 %v381, %v379
        %v406 = vpack.c.b16 %v382, %v380
        %v407 = vpack.c.b16 %v385, %v383
        %v408 = vpack.c.b16 %v386, %v384
        %v409 = vpack.c.b16 %v389, %v387
        %v410 = vpack.c.b16 %v390, %v388
        %v411 = vpack.c.b16 %v393, %v391
        %v412 = vpack.c.b16 %v394, %v392
        %v413 = vpack.c.b16 %v397, %v395
        %v414 = vpack.c.b16 %v398, %v396
        %431 = vmatprep.subr.bf16.mxu0 %v400
        %432 = vmatpush1.bf16.msra.mxu0 %v399
        %433 = vmatprep.subr.bf16.mxu0 %v402
        %434 = vmatpush1.bf16.msra.mxu0 %v401
        %435 = vmatprep.subr.bf16.mxu0 %v404
        %436 = vmatpush1.bf16.msra.mxu0 %v403
        %437 = vmatprep.subr.bf16.mxu0 %v406
        %438 = vmatpush1.bf16.msra.mxu0 %v405
        %439 = vmatprep.subr.bf16.mxu0 %v408
        %440 = vmatpush1.bf16.msra.mxu0 %v407
        %441 = vmatprep.subr.bf16.mxu0 %v410
        %442 = vmatpush1.bf16.msra.mxu0 %v409
        %443 = vmatprep.subr.bf16.mxu0 %v412
        %444 = vmatpush1.bf16.msra.mxu0 %v411
        %445 = vmatprep.subr.bf16.mxu0 %v414
        %446 = vmatpush1.bf16.msra.mxu0 %v413
        %447 = vmatprep.subr.bf16.mxu0 0
        %448 = vmatpush1.bf16.msra.mxu0 0
        %449 = vmatprep.subr.bf16.mxu0 0
        %450 = vmatpush1.bf16.msra.mxu0 0
        %451 = vmatprep.subr.bf16.mxu0 0
        %452 = vmatpush1.bf16.msra.mxu0 0
        %453 = vmatprep.subr.bf16.mxu0 0
        %454 = vmatpush1.bf16.msra.mxu0 0
        %455 = vmatprep.subr.bf16.mxu0 0
        %456 = vmatpush1.bf16.msra.mxu0 0
        %457 = vmatprep.subr.bf16.mxu0 0
        %458 = vmatpush1.bf16.msra.mxu0 0
        %459 = vmatprep.subr.bf16.mxu0 0
        %460 = vmatpush1.bf16.msra.mxu0 0
        %461 = vmatprep.subr.bf16.mxu0 0
        %462 = vmatpush1.bf16.msra.mxu0 0
        %463 = vmatprep.mubr.bf16.mxu0 0
        %464 = vmatmul.mubr.bf16.gmra.mrb[0].mxu0 %v307
        %v465 = vpop.f32.mrb[0].mxu0
        %v466 = vadd.f32 %v344, %v465
        %v467 = vpop.f32.mrb[0].mxu0
        %v468 = vadd.f32 %v348, %v467
        %v469 = vpop.f32.mrb[0].mxu0
        %v470 = vadd.f32 %v344, %v469
        %v471 = vpop.f32.mrb[0].mxu0
        %v472 = vadd.f32 %v348, %v471
        %473 = vmatprep.mubr.bf16.mxu0 0
        %474 = vmatmul.mubr.bf16.gmra.mrb[0].mxu0 %v308
        %v475 = vpop.f32.mrb[0].mxu0
        %v476 = vadd.f32 %v344, %v475
        %v477 = vpop.f32.mrb[0].mxu0
        %v478 = vadd.f32 %v348, %v477
        %v479 = vpop.f32.mrb[0].mxu0
        %v480 = vadd.f32 %v344, %v479
        %v481 = vpop.f32.mrb[0].mxu0
        %v482 = vadd.f32 %v348, %v481
        %483 = vmatprep.mubr.bf16.mxu0 0
        %484 = vmatmul.mubr.bf16.gmra.mrb[0].mxu0 %v309
        %v485 = vpop.f32.mrb[0].mxu0
        %v486 = vadd.f32 %v344, %v485
        %v487 = vpop.f32.mrb[0].mxu0
        %v488 = vadd.f32 %v348, %v487
        %v489 = vpop.f32.mrb[0].mxu0
        %v490 = vadd.f32 %v344, %v489
        %v491 = vpop.f32.mrb[0].mxu0
        %v492 = vadd.f32 %v348, %v491
        %493 = vmatprep.mubr.bf16.mxu0 0
        %494 = vmatmul.mubr.bf16.gmra.mrb[0].mxu0 %v310
        %v495 = vpop.f32.mrb[0].mxu0
        %v496 = vadd.f32 %v344, %v495
        %v497 = vpop.f32.mrb[0].mxu0
        %v498 = vadd.f32 %v348, %v497
        %v499 = vpop.f32.mrb[0].mxu0
        %v500 = vadd.f32 %v344, %v499
        %v501 = vpop.f32.mrb[0].mxu0
        %v502 = vadd.f32 %v348, %v501
        %503 = vmatprep.mubr.bf16.mxu0 0
        %504 = vmatmul.mubr.bf16.gmra.mrb[0].mxu0 %v311
        %v505 = vpop.f32.mrb[0].mxu0
        %v506 = vadd.f32 %v344, %v505
        %v507 = vpop.f32.mrb[0].mxu0
        %v508 = vadd.f32 %v348, %v507
        %v509 = vpop.f32.mrb[0].mxu0
        %v510 = vadd.f32 %v344, %v509
        %v511 = vpop.f32.mrb[0].mxu0
        %v512 = vadd.f32 %v348, %v511
        %513 = vmatprep.mubr.bf16.mxu0 0
        %514 = vmatmul.mubr.bf16.gmra.mrb[0].mxu0 %v312
        %v515 = vpop.f32.mrb[0].mxu0
        %v516 = vadd.f32 %v344, %v515
        %v517 = vpop.f32.mrb[0].mxu0
        %v518 = vadd.f32 %v348, %v517
        %v519 = vpop.f32.mrb[0].mxu0
        %v520 = vadd.f32 %v344, %v519
        %v521 = vpop.f32.mrb[0].mxu0
        %v522 = vadd.f32 %v348, %v521
        %523 = vmatprep.mubr.bf16.mxu0 0
        %524 = vmatmul.mubr.bf16.gmra.mrb[0].mxu0 %v313
        %v525 = vpop.f32.mrb[0].mxu0
        %v526 = vadd.f32 %v344, %v525
        %v527 = vpop.f32.mrb[0].mxu0
        %v528 = vadd.f32 %v348, %v527
        %v529 = vpop.f32.mrb[0].mxu0
        %v530 = vadd.f32 %v344, %v529
        %v531 = vpop.f32.mrb[0].mxu0
        %v532 = vadd.f32 %v348, %v531
        %533 = vmatprep.mubr.bf16.mxu0 0
        %534 = vmatmul.mubr.bf16.gmra.mrb[0].mxu0 %v314
        %v535 = vpop.f32.mrb[0].mxu0
        %v536 = vadd.f32 %v344, %v535
        %v537 = vpop.f32.mrb[0].mxu0
        %v538 = vadd.f32 %v348, %v537
        %v539 = vpop.f32.mrb[0].mxu0
        %v540 = vadd.f32 %v344, %v539
        %v541 = vpop.f32.mrb[0].mxu0
        %v542 = vadd.f32 %v348, %v541
        %543 = vmatprep.mubr.bf16.mxu0 0
        %544 = vmatmul.mubr.bf16.gmra.mrb[0].mxu0 %v315
        %v545 = vpop.f32.mrb[0].mxu0
        %v546 = vadd.f32 %v344, %v545
        %v547 = vpop.f32.mrb[0].mxu0
        %v548 = vadd.f32 %v348, %v547
        %v549 = vpop.f32.mrb[0].mxu0
        %v550 = vadd.f32 %v344, %v549
        %v551 = vpop.f32.mrb[0].mxu0
        %v552 = vadd.f32 %v348, %v551
        %553 = vmatprep.mubr.bf16.mxu0 0
        %554 = vmatmul.mubr.bf16.gmra.mrb[0].mxu0 %v316
        %v555 = vpop.f32.mrb[0].mxu0
        %v556 = vadd.f32 %v344, %v555
        %v557 = vpop.f32.mrb[0].mxu0
        %v558 = vadd.f32 %v348, %v557
        %v559 = vpop.f32.mrb[0].mxu0
        %v560 = vadd.f32 %v344, %v559
        %v561 = vpop.f32.mrb[0].mxu0
        %v562 = vadd.f32 %v348, %v561
        %563 = vmatprep.mubr.bf16.mxu0 0
        %564 = vmatmul.mubr.bf16.gmra.mrb[0].mxu0 %v317
        %v565 = vpop.f32.mrb[0].mxu0
        %v566 = vadd.f32 %v344, %v565
        %v567 = vpop.f32.mrb[0].mxu0
        %v568 = vadd.f32 %v348, %v567
        %v569 = vpop.f32.mrb[0].mxu0
        %v570 = vadd.f32 %v344, %v569
        %v571 = vpop.f32.mrb[0].mxu0
        %v572 = vadd.f32 %v348, %v571
        %573 = vmatprep.mubr.bf16.mxu0 0
        %574 = vmatmul.mubr.bf16.gmra.mrb[0].mxu0 %v318
        %v575 = vpop.f32.mrb[0].mxu0
        %v576 = vadd.f32 %v344, %v575
        %v577 = vpop.f32.mrb[0].mxu0
        %v578 = vadd.f32 %v348, %v577
        %v579 = vpop.f32.mrb[0].mxu0
        %v580 = vadd.f32 %v344, %v579
        %v581 = vpop.f32.mrb[0].mxu0
        %v582 = vadd.f32 %v348, %v581
        %583 = vmatprep.mubr.bf16.mxu0 0
        %584 = vmatmul.mubr.bf16.gmra.mrb[0].mxu0 %v319
        %v585 = vpop.f32.mrb[0].mxu0
        %v586 = vadd.f32 %v344, %v585
        %v587 = vpop.f32.mrb[0].mxu0
        %v588 = vadd.f32 %v348, %v587
        %v589 = vpop.f32.mrb[0].mxu0
        %v590 = vadd.f32 %v344, %v589
        %v591 = vpop.f32.mrb[0].mxu0
        %v592 = vadd.f32 %v348, %v591
        %593 = vmatprep.mubr.bf16.mxu0 0
        %594 = vmatmul.mubr.bf16.gmra.mrb[0].mxu0 %v320
        %v595 = vpop.f32.mrb[0].mxu0
        %v596 = vadd.f32 %v344, %v595
        %v597 = vpop.f32.mrb[0].mxu0
        %v598 = vadd.f32 %v348, %v597
        %v599 = vpop.f32.mrb[0].mxu0
        %v600 = vadd.f32 %v344, %v599
        %v601 = vpop.f32.mrb[0].mxu0
        %v602 = vadd.f32 %v348, %v601
        %603 = vmatprep.mubr.bf16.mxu0 0
        %604 = vmatmul.mubr.bf16.gmra.mrb[0].mxu0 %v321
        %v605 = vpop.f32.mrb[0].mxu0
        %v606 = vadd.f32 %v344, %v605
        %v607 = vpop.f32.mrb[0].mxu0
        %v608 = vadd.f32 %v348, %v607
        %v609 = vpop.f32.mrb[0].mxu0
        %v610 = vadd.f32 %v344, %v609
        %v611 = vpop.f32.mrb[0].mxu0
        %v612 = vadd.f32 %v348, %v611
        %613 = vmatprep.mubr.bf16.mxu0 0
        %614 = vmatmul.mubr.bf16.gmra.mrb[0].mxu0 %v322
        %v615 = vpop.f32.mrb[0].mxu0
        %v616 = vadd.f32 %v344, %v615
        %v617 = vpop.f32.mrb[0].mxu0
        %v618 = vadd.f32 %v348, %v617
        %v619 = vpop.f32.mrb[0].mxu0
        %v620 = vadd.f32 %v344, %v619
        %v621 = vpop.f32.mrb[0].mxu0
        %v622 = vadd.f32 %v348, %v621
        %623 = vdwg.mxu0
        %v624 = vmax.f32 %v466, 0.0
        %v625 = vmax.f32 %v468, 0.0
        %v626 = vmax.f32 %v470, 0.0
        %v627 = vmax.f32 %v472, 0.0
        %v628 = vmax.f32 %v476, 0.0
        %v629 = vmax.f32 %v478, 0.0
        %v630 = vmax.f32 %v480, 0.0
        %v631 = vmax.f32 %v482, 0.0
        %v632 = vmax.f32 %v486, 0.0
        %v633 = vmax.f32 %v488, 0.0
        %v634 = vmax.f32 %v490, 0.0
        %v635 = vmax.f32 %v492, 0.0
        %v636 = vmax.f32 %v496, 0.0
        %v637 = vmax.f32 %v498, 0.0
        %v638 = vmax.f32 %v500, 0.0
        %v639 = vmax.f32 %v502, 0.0
        %v640 = vmax.f32 %v506, 0.0
        %v641 = vmax.f32 %v508, 0.0
        %v642 = vmax.f32 %v510, 0.0
        %v643 = vmax.f32 %v512, 0.0
        %v644 = vmax.f32 %v516, 0.0
        %v645 = vmax.f32 %v518, 0.0
        %v646 = vmax.f32 %v520, 0.0
        %v647 = vmax.f32 %v522, 0.0
        %v648 = vmax.f32 %v526, 0.0
        %v649 = vmax.f32 %v528, 0.0
        %v650 = vmax.f32 %v530, 0.0
        %v651 = vmax.f32 %v532, 0.0
        %v652 = vmax.f32 %v536, 0.0
        %v653 = vmax.f32 %v538, 0.0
        %v654 = vmax.f32 %v540, 0.0
        %v655 = vmax.f32 %v542, 0.0
        %v656 = vmax.f32 %v546, 0.0
        %v657 = vmax.f32 %v548, 0.0
        %v658 = vmax.f32 %v550, 0.0
        %v659 = vmax.f32 %v552, 0.0
        %v660 = vmax.f32 %v556, 0.0
        %v661 = vmax.f32 %v558, 0.0
        %v662 = vmax.f32 %v560, 0.0
        %v663 = vmax.f32 %v562, 0.0
        %v664 = vmax.f32 %v566, 0.0
        %v665 = vmax.f32 %v568, 0.0
        %v666 = vmax.f32 %v570, 0.0
        %v667 = vmax.f32 %v572, 0.0
        %v668 = vmax.f32 %v576, 0.0
        %v669 = vmax.f32 %v578, 0.0
        %v670 = vmax.f32 %v580, 0.0
        %v671 = vmax.f32 %v582, 0.0
        %v672 = vmax.f32 %v586, 0.0
        %v673 = vmax.f32 %v588, 0.0
        %v674 = vmax.f32 %v590, 0.0
        %v675 = vmax.f32 %v592, 0.0
        %v676 = vmax.f32 %v596, 0.0
        %v677 = vmax.f32 %v598, 0.0
        %v678 = vmax.f32 %v600, 0.0
        %v679 = vmax.f32 %v602, 0.0
        %v680 = vmax.f32 %v606, 0.0
        %v681 = vmax.f32 %v608, 0.0
        %v682 = vmax.f32 %v610, 0.0
        %v683 = vmax.f32 %v612, 0.0
        %v684 = vmax.f32 %v616, 0.0
        %v685 = vmax.f32 %v618, 0.0
        %v686 = vmax.f32 %v620, 0.0
        %v687 = vmax.f32 %v622, 0.0
        %v688 = vpack.c.bf16 %v626, %v624
        %v689 = vpack.c.bf16 %v627, %v625
        %v690 = vpack.c.bf16 %v630, %v628
        %v691 = vpack.c.bf16 %v631, %v629
        %v692 = vpack.c.bf16 %v634, %v632
        %v693 = vpack.c.bf16 %v635, %v633
        %v694 = vpack.c.bf16 %v638, %v636
        %v695 = vpack.c.bf16 %v639, %v637
        %v696 = vpack.c.bf16 %v642, %v640
        %v697 = vpack.c.bf16 %v643, %v641
        %v698 = vpack.c.bf16 %v646, %v644
        %v699 = vpack.c.bf16 %v647, %v645
        %v700 = vpack.c.bf16 %v650, %v648
        %v701 = vpack.c.bf16 %v651, %v649
        %v702 = vpack.c.bf16 %v654, %v652
        %v703 = vpack.c.bf16 %v655, %v653
        %v704 = vpack.c.bf16 %v658, %v656
        %v705 = vpack.c.bf16 %v659, %v657
        %v706 = vpack.c.bf16 %v662, %v660
        %v707 = vpack.c.bf16 %v663, %v661
        %v708 = vpack.c.bf16 %v666, %v664
        %v709 = vpack.c.bf16 %v667, %v665
        %v710 = vpack.c.bf16 %v670, %v668
        %v711 = vpack.c.bf16 %v671, %v669
        %v712 = vpack.c.bf16 %v674, %v672
        %v713 = vpack.c.bf16 %v675, %v673
        %v714 = vpack.c.bf16 %v678, %v676
        %v715 = vpack.c.bf16 %v679, %v677
        %v716 = vpack.c.bf16 %v682, %v680
        %v717 = vpack.c.bf16 %v683, %v681
        %v718 = vpack.c.bf16 %v686, %v684
        %v719 = vpack.c.bf16 %v687, %v685
        %v720 = vld [vmem:[%s4] sm:$0xf]
        %v721 = vld [vmem:[%s4 + $0x4] sm:$0xf]
        %v722 = vld [vmem:[%s4 + $0x8] sm:$0xf]
        %v723 = vld [vmem:[%s4 + $0xc] sm:$0xf]
        %v724 = vld [vmem:[%s4 + $0x10] sm:$0xf]
        %v725 = vld [vmem:[%s4 + $0x14] sm:$0xf]
        %v726 = vld [vmem:[%s4 + $0x18] sm:$0xf]
        %v727 = vld [vmem:[%s4 + $0x1c] sm:$0xf]
        %v728 = vld [vmem:[%s4 + $0x20] sm:$0xf]
        %v729 = vld [vmem:[%s4 + $0x24] sm:$0xf]
        %v730 = vld [vmem:[%s4 + $0x28] sm:$0xf]
        %v731 = vld [vmem:[%s4 + $0x2c] sm:$0xf]
        %v732 = vld [vmem:[%s4 + $0x30] sm:$0xf]
        %v733 = vld [vmem:[%s4 + $0x34] sm:$0xf]
        %v734 = vld [vmem:[%s4 + $0x38] sm:$0xf]
        %v735 = vld [vmem:[%s4 + $0x3c] sm:$0xf]
        %v736 = vld [vmem:[%s4 + $0x40] sm:$0xf]
        %v737 = vld [vmem:[%s4 + $0x44] sm:$0xf]
        %v738 = vld [vmem:[%s4 + $0x48] sm:$0xf]
        %v739 = vld [vmem:[%s4 + $0x4c] sm:$0xf]
        %v740 = vld [vmem:[%s4 + $0x50] sm:$0xf]
        %v741 = vld [vmem:[%s4 + $0x54] sm:$0xf]
        %v742 = vld [vmem:[%s4 + $0x58] sm:$0xf]
        %v743 = vld [vmem:[%s4 + $0x5c] sm:$0xf]
        %v744 = vld [vmem:[%s4 + $0x60] sm:$0xf]
        %v745 = vld [vmem:[%s4 + $0x64] sm:$0xf]
        %v746 = vld [vmem:[%s4 + $0x68] sm:$0xf]
        %v747 = vld [vmem:[%s4 + $0x6c] sm:$0xf]
        %v748 = vld [vmem:[%s4 + $0x70] sm:$0xf]
        %v749 = vld [vmem:[%s4 + $0x74] sm:$0xf]
        %v750 = vld [vmem:[%s4 + $0x78] sm:$0xf]
        %v751 = vld [vmem:[%s4 + $0x7c] sm:$0xf]
        %v752 = vld [vmem:[%s5] sm:$0x1]
        %v754 = vlaneseq
        %v755 = vshrl.u32 %v754, 7
        %v756 = vsub.s32 0, %v755
        %v757 = vrot.slane %v752, %v756
        %v791 = vunpack.c.l.b16 %v720
        %v792 = vunpack.c.l.b16 %v721
        %v793 = vunpack.c.l.b16 %v722
        %v794 = vunpack.c.l.b16 %v723
        %v795 = vunpack.c.l.b16 %v724
        %v796 = vunpack.c.l.b16 %v725
        %v797 = vunpack.c.l.b16 %v726
        %v798 = vunpack.c.l.b16 %v727
        %v799 = vunpack.c.l.b16 %v728
        %v800 = vunpack.c.l.b16 %v729
        %v801 = vunpack.c.l.b16 %v730
        %v802 = vunpack.c.l.b16 %v731
        %v803 = vunpack.c.l.b16 %v732
        %v804 = vunpack.c.l.b16 %v733
        %v805 = vunpack.c.l.b16 %v734
        %v806 = vunpack.c.l.b16 %v735
        %v807 = vunpack.c.l.b16 %v736
        %v808 = vunpack.c.l.b16 %v737
        %v809 = vunpack.c.l.b16 %v738
        %v810 = vunpack.c.l.b16 %v739
        %v811 = vunpack.c.l.b16 %v740
        %v812 = vunpack.c.l.b16 %v741
        %v813 = vunpack.c.l.b16 %v742
        %v814 = vunpack.c.l.b16 %v743
        %v815 = vunpack.c.l.b16 %v744
        %v816 = vunpack.c.l.b16 %v745
        %v817 = vunpack.c.l.b16 %v746
        %v818 = vunpack.c.l.b16 %v747
        %v819 = vunpack.c.l.b16 %v748
        %v820 = vunpack.c.l.b16 %v749
        %v821 = vunpack.c.l.b16 %v750
        %v822 = vunpack.c.l.b16 %v751
        %v823 = vpack.c.b16 %v792, %v791
        %v824 = vpack.c.b16 %v794, %v793
        %v825 = vpack.c.b16 %v796, %v795
        %v826 = vpack.c.b16 %v798, %v797
        %v827 = vpack.c.b16 %v800, %v799
        %v828 = vpack.c.b16 %v802, %v801
        %v829 = vpack.c.b16 %v804, %v803
        %v830 = vpack.c.b16 %v806, %v805
        %v831 = vpack.c.b16 %v808, %v807
        %v832 = vpack.c.b16 %v810, %v809
        %v833 = vpack.c.b16 %v812, %v811
        %v834 = vpack.c.b16 %v814, %v813
        %v835 = vpack.c.b16 %v816, %v815
        %v836 = vpack.c.b16 %v818, %v817
        %v837 = vpack.c.b16 %v820, %v819
        %v838 = vpack.c.b16 %v822, %v821
        %855 = vmatprep.subr.bf16.mxu0 0
        %856 = vmatpush1.bf16.msra.mxu0 %v823
        %857 = vmatprep.subr.bf16.mxu0 0
        %858 = vmatpush1.bf16.msra.mxu0 %v824
        %859 = vmatprep.subr.bf16.mxu0 0
        %860 = vmatpush1.bf16.msra.mxu0 %v825
        %861 = vmatprep.subr.bf16.mxu0 0
        %862 = vmatpush1.bf16.msra.mxu0 %v826
        %863 = vmatprep.subr.bf16.mxu0 0
        %864 = vmatpush1.bf16.msra.mxu0 %v827
        %865 = vmatprep.subr.bf16.mxu0 0
        %866 = vmatpush1.bf16.msra.mxu0 %v828
        %867 = vmatprep.subr.bf16.mxu0 0
        %868 = vmatpush1.bf16.msra.mxu0 %v829
        %869 = vmatprep.subr.bf16.mxu0 0
        %870 = vmatpush1.bf16.msra.mxu0 %v830
        %871 = vmatprep.subr.bf16.mxu0 0
        %872 = vmatpush1.bf16.msra.mxu0 %v831
        %873 = vmatprep.subr.bf16.mxu0 0
        %874 = vmatpush1.bf16.msra.mxu0 %v832
        %875 = vmatprep.subr.bf16.mxu0 0
        %876 = vmatpush1.bf16.msra.mxu0 %v833
        %877 = vmatprep.subr.bf16.mxu0 0
        %878 = vmatpush1.bf16.msra.mxu0 %v834
        %879 = vmatprep.subr.bf16.mxu0 0
        %880 = vmatpush1.bf16.msra.mxu0 %v835
        %881 = vmatprep.subr.bf16.mxu0 0
        %882 = vmatpush1.bf16.msra.mxu0 %v836
        %883 = vmatprep.subr.bf16.mxu0 0
        %884 = vmatpush1.bf16.msra.mxu0 %v837
        %885 = vmatprep.subr.bf16.mxu0 0
        %886 = vmatpush1.bf16.msra.mxu0 %v838
        %887 = vmatprep.mubr.bf16.mxu0 %v689
        %888 = vmatmul.mubr.bf16.gmra.mrb[0].mxu0 %v688
        %v889 = vpop.f32.mrb[0].mxu0
        %v890 = vadd.f32 %v757, %v889
        %v891 = vpop.f32.mrb[0].mxu0
        %v892 = vpop.f32.mrb[0].mxu0
        %v893 = vadd.f32 %v757, %v892
        %v894 = vpop.f32.mrb[0].mxu0
        %895 = vmatprep.mubr.bf16.mxu0 %v691
        %896 = vmatmul.mubr.bf16.gmra.mrb[0].mxu0 %v690
        %v897 = vpop.f32.mrb[0].mxu0
        %v898 = vadd.f32 %v757, %v897
        %v899 = vpop.f32.mrb[0].mxu0
        %v900 = vpop.f32.mrb[0].mxu0
        %v901 = vadd.f32 %v757, %v900
        %v902 = vpop.f32.mrb[0].mxu0
        %903 = vmatprep.mubr.bf16.mxu0 %v693
        %904 = vmatmul.mubr.bf16.gmra.mrb[0].mxu0 %v692
        %v905 = vpop.f32.mrb[0].mxu0
        %v906 = vadd.f32 %v757, %v905
        %v907 = vpop.f32.mrb[0].mxu0
        %v908 = vpop.f32.mrb[0].mxu0
        %v909 = vadd.f32 %v757, %v908
        %v910 = vpop.f32.mrb[0].mxu0
        %911 = vmatprep.mubr.bf16.mxu0 %v695
        %912 = vmatmul.mubr.bf16.gmra.mrb[0].mxu0 %v694
        %v913 = vpop.f32.mrb[0].mxu0
        %v914 = vadd.f32 %v757, %v913
        %v915 = vpop.f32.mrb[0].mxu0
        %v916 = vpop.f32.mrb[0].mxu0
        %v917 = vadd.f32 %v757, %v916
        %v918 = vpop.f32.mrb[0].mxu0
        %919 = vmatprep.mubr.bf16.mxu0 %v697
        %920 = vmatmul.mubr.bf16.gmra.mrb[0].mxu0 %v696
        %v921 = vpop.f32.mrb[0].mxu0
        %v922 = vadd.f32 %v757, %v921
        %v923 = vpop.f32.mrb[0].mxu0
        %v924 = vpop.f32.mrb[0].mxu0
        %v925 = vadd.f32 %v757, %v924
        %v926 = vpop.f32.mrb[0].mxu0
        %927 = vmatprep.mubr.bf16.mxu0 %v699
        %928 = vmatmul.mubr.bf16.gmra.mrb[0].mxu0 %v698
        %v929 = vpop.f32.mrb[0].mxu0
        %v930 = vadd.f32 %v757, %v929
        %v931 = vpop.f32.mrb[0].mxu0
        %v932 = vpop.f32.mrb[0].mxu0
        %v933 = vadd.f32 %v757, %v932
        %v934 = vpop.f32.mrb[0].mxu0
        %935 = vmatprep.mubr.bf16.mxu0 %v701
        %936 = vmatmul.mubr.bf16.gmra.mrb[0].mxu0 %v700
        %v937 = vpop.f32.mrb[0].mxu0
        %v938 = vadd.f32 %v757, %v937
        %v939 = vpop.f32.mrb[0].mxu0
        %v940 = vpop.f32.mrb[0].mxu0
        %v941 = vadd.f32 %v757, %v940
        %v942 = vpop.f32.mrb[0].mxu0
        %943 = vmatprep.mubr.bf16.mxu0 %v703
        %944 = vmatmul.mubr.bf16.gmra.mrb[0].mxu0 %v702
        %v945 = vpop.f32.mrb[0].mxu0
        %v946 = vadd.f32 %v757, %v945
        %v947 = vpop.f32.mrb[0].mxu0
        %v948 = vpop.f32.mrb[0].mxu0
        %v949 = vadd.f32 %v757, %v948
        %v950 = vpop.f32.mrb[0].mxu0
        %951 = vmatprep.mubr.bf16.mxu0 %v705
        %952 = vmatmul.mubr.bf16.gmra.mrb[0].mxu0 %v704
        %v953 = vpop.f32.mrb[0].mxu0
        %v954 = vadd.f32 %v757, %v953
        %v955 = vpop.f32.mrb[0].mxu0
        %v956 = vpop.f32.mrb[0].mxu0
        %v957 = vadd.f32 %v757, %v956
        %v958 = vpop.f32.mrb[0].mxu0
        %959 = vmatprep.mubr.bf16.mxu0 %v707
        %960 = vmatmul.mubr.bf16.gmra.mrb[0].mxu0 %v706
        %v961 = vpop.f32.mrb[0].mxu0
        %v962 = vadd.f32 %v757, %v961
        %v963 = vpop.f32.mrb[0].mxu0
        %v964 = vpop.f32.mrb[0].mxu0
        %v965 = vadd.f32 %v757, %v964
        %v966 = vpop.f32.mrb[0].mxu0
        %967 = vmatprep.mubr.bf16.mxu0 %v709
        %968 = vmatmul.mubr.bf16.gmra.mrb[0].mxu0 %v708
        %v969 = vpop.f32.mrb[0].mxu0
        %v970 = vadd.f32 %v757, %v969
        %v971 = vpop.f32.mrb[0].mxu0
        %v972 = vpop.f32.mrb[0].mxu0
        %v973 = vadd.f32 %v757, %v972
        %v974 = vpop.f32.mrb[0].mxu0
        %975 = vmatprep.mubr.bf16.mxu0 %v711
        %976 = vmatmul.mubr.bf16.gmra.mrb[0].mxu0 %v710
        %v977 = vpop.f32.mrb[0].mxu0
        %v978 = vadd.f32 %v757, %v977
        %v979 = vpop.f32.mrb[0].mxu0
        %v980 = vpop.f32.mrb[0].mxu0
        %v981 = vadd.f32 %v757, %v980
        %v982 = vpop.f32.mrb[0].mxu0
        %983 = vmatprep.mubr.bf16.mxu0 %v713
        %984 = vmatmul.mubr.bf16.gmra.mrb[0].mxu0 %v712
        %v985 = vpop.f32.mrb[0].mxu0
        %v986 = vadd.f32 %v757, %v985
        %v987 = vpop.f32.mrb[0].mxu0
        %v988 = vpop.f32.mrb[0].mxu0
        %v989 = vadd.f32 %v757, %v988
        %v990 = vpop.f32.mrb[0].mxu0
        %991 = vmatprep.mubr.bf16.mxu0 %v715
        %992 = vmatmul.mubr.bf16.gmra.mrb[0].mxu0 %v714
        %v993 = vpop.f32.mrb[0].mxu0
        %v994 = vadd.f32 %v757, %v993
        %v995 = vpop.f32.mrb[0].mxu0
        %v996 = vpop.f32.mrb[0].mxu0
        %v997 = vadd.f32 %v757, %v996
        %v998 = vpop.f32.mrb[0].mxu0
        %999 = vmatprep.mubr.bf16.mxu0 %v717
        %1000 = vmatmul.mubr.bf16.gmra.mrb[0].mxu0 %v716
        %v1001 = vpop.f32.mrb[0].mxu0
        %v1002 = vadd.f32 %v757, %v1001
        %v1003 = vpop.f32.mrb[0].mxu0
        %v1004 = vpop.f32.mrb[0].mxu0
        %v1005 = vadd.f32 %v757, %v1004
        %v1006 = vpop.f32.mrb[0].mxu0
        %1007 = vmatprep.mubr.bf16.mxu0 %v719
        %1008 = vmatmul.mubr.bf16.gmra.mrb[0].mxu0 %v718
        %v1009 = vpop.f32.mrb[0].mxu0
        %v1010 = vadd.f32 %v757, %v1009
        %v1011 = vpop.f32.mrb[0].mxu0
        %v1012 = vpop.f32.mrb[0].mxu0
        %v1013 = vadd.f32 %v757, %v1012
        %v1014 = vpop.f32.mrb[0].mxu0
        %1015 = vdwg.mxu0
        %s1016 = sld [smem:[#allocation2]]
        %v1017 = vstv %s1016
        %v1018 = vmul.f32 %v890, %v1017
        %v1019 = vmul.f32 %v893, %v1017
        %v1020 = vmul.f32 %v898, %v1017
        %v1021 = vmul.f32 %v901, %v1017
        %v1022 = vmul.f32 %v906, %v1017
        %v1023 = vmul.f32 %v909, %v1017
        %v1024 = vmul.f32 %v914, %v1017
        %v1025 = vmul.f32 %v917, %v1017
        %v1026 = vmul.f32 %v922, %v1017
        %v1027 = vmul.f32 %v925, %v1017
        %v1028 = vmul.f32 %v930, %v1017
        %v1029 = vmul.f32 %v933, %v1017
        %v1030 = vmul.f32 %v938, %v1017
        %v1031 = vmul.f32 %v941, %v1017
        %v1032 = vmul.f32 %v946, %v1017
        %v1033 = vmul.f32 %v949, %v1017
        %v1034 = vmul.f32 %v954, %v1017
        %v1035 = vmul.f32 %v957, %v1017
        %v1036 = vmul.f32 %v962, %v1017
        %v1037 = vmul.f32 %v965, %v1017
        %v1038 = vmul.f32 %v970, %v1017
        %v1039 = vmul.f32 %v973, %v1017
        %v1040 = vmul.f32 %v978, %v1017
        %v1041 = vmul.f32 %v981, %v1017
        %v1042 = vmul.f32 %v986, %v1017
        %v1043 = vmul.f32 %v989, %v1017
        %v1044 = vmul.f32 %v994, %v1017
        %v1045 = vmul.f32 %v997, %v1017
        %v1046 = vmul.f32 %v1002, %v1017
        %v1047 = vmul.f32 %v1005, %v1017
        %v1048 = vmul.f32 %v1010, %v1017
        %v1049 = vmul.f32 %v1013, %v1017
        %v1050 = vadd.f32 %v275, %v1018
        %v1051 = vadd.f32 %v276, %v1019
        %v1052 = vadd.f32 %v277, %v1020
        %v1053 = vadd.f32 %v278, %v1021
        %v1054 = vadd.f32 %v279, %v1022
        %v1055 = vadd.f32 %v280, %v1023
        %v1056 = vadd.f32 %v281, %v1024
        %v1057 = vadd.f32 %v282, %v1025
        %v1058 = vadd.f32 %v283, %v1026
        %v1059 = vadd.f32 %v284, %v1027
        %v1060 = vadd.f32 %v285, %v1028
        %v1061 = vadd.f32 %v286, %v1029
        %v1062 = vadd.f32 %v287, %v1030
        %v1063 = vadd.f32 %v288, %v1031
        %v1064 = vadd.f32 %v289, %v1032
        %v1065 = vadd.f32 %v290, %v1033
        %v1066 = vadd.f32 %v291, %v1034
        %v1067 = vadd.f32 %v292, %v1035
        %v1068 = vadd.f32 %v293, %v1036
        %v1069 = vadd.f32 %v294, %v1037
        %v1070 = vadd.f32 %v295, %v1038
        %v1071 = vadd.f32 %v296, %v1039
        %v1072 = vadd.f32 %v297, %v1040
        %v1073 = vadd.f32 %v298, %v1041
        %v1074 = vadd.f32 %v299, %v1042
        %v1075 = vadd.f32 %v300, %v1043
        %v1076 = vadd.f32 %v301, %v1044
        %v1077 = vadd.f32 %v302, %v1045
        %v1078 = vadd.f32 %v303, %v1046
        %v1079 = vadd.f32 %v304, %v1047
        %v1080 = vadd.f32 %v305, %v1048
        %v1081 = vadd.f32 %v306, %v1049
        %1082 = vst [vmem:[%s254] sm:$0xff] %v1050
        %1083 = vst [vmem:[%s254 + $0x8] sm:$0xff] %v1051
        %1084 = vst [vmem:[%s254 + $0x10] sm:$0xff] %v1052
        %1085 = vst [vmem:[%s254 + $0x18] sm:$0xff] %v1053
        %1086 = vst [vmem:[%s254 + $0x20] sm:$0xff] %v1054
        %1087 = vst [vmem:[%s254 + $0x28] sm:$0xff] %v1055
        %1088 = vst [vmem:[%s254 + $0x30] sm:$0xff] %v1056
        %1089 = vst [vmem:[%s254 + $0x38] sm:$0xff] %v1057
        %1090 = vst [vmem:[%s254 + $0x40] sm:$0xff] %v1058
        %1091 = vst [vmem:[%s254 + $0x48] sm:$0xff] %v1059
        %1092 = vst [vmem:[%s254 + $0x50] sm:$0xff] %v1060
        %1093 = vst [vmem:[%s254 + $0x58] sm:$0xff] %v1061
        %1094 = vst [vmem:[%s254 + $0x60] sm:$0xff] %v1062
        %1095 = vst [vmem:[%s254 + $0x68] sm:$0xff] %v1063
        %1096 = vst [vmem:[%s254 + $0x70] sm:$0xff] %v1064
        %1097 = vst [vmem:[%s254 + $0x78] sm:$0xff] %v1065
        %1098 = vst [vmem:[%s254 + $0x80] sm:$0xff] %v1066
        %1099 = vst [vmem:[%s254 + $0x88] sm:$0xff] %v1067
        %1100 = vst [vmem:[%s254 + $0x90] sm:$0xff] %v1068
        %1101 = vst [vmem:[%s254 + $0x98] sm:$0xff] %v1069
        %1102 = vst [vmem:[%s254 + $0xa0] sm:$0xff] %v1070
        %1103 = vst [vmem:[%s254 + $0xa8] sm:$0xff] %v1071
        %1104 = vst [vmem:[%s254 + $0xb0] sm:$0xff] %v1072
        %1105 = vst [vmem:[%s254 + $0xb8] sm:$0xff] %v1073
        %1106 = vst [vmem:[%s254 + $0xc0] sm:$0xff] %v1074
        %1107 = vst [vmem:[%s254 + $0xc8] sm:$0xff] %v1075
        %1108 = vst [vmem:[%s254 + $0xd0] sm:$0xff] %v1076
        %1109 = vst [vmem:[%s254 + $0xd8] sm:$0xff] %v1077
        %1110 = vst [vmem:[%s254 + $0xe0] sm:$0xff] %v1078
        %1111 = vst [vmem:[%s254 + $0xe8] sm:$0xff] %v1079
        %1112 = vst [vmem:[%s254 + $0xf0] sm:$0xff] %v1080
        %1113 = vst [vmem:[%s254 + $0xf8] sm:$0xff] %v1081
        %s1114 = sand.u32 %s157, 1
        %s1115 = sand.u32 %s157, 1
        %s1116 = smul.addr %s1115, 256
        %s1117 = scalar_lea.vmem [#allocation3], %s1116
        // Predicated region
        $region45: #{hypernetwork_forward.1} parent=43 // pred_check
          %p1118 = pneg %p167
        $region46: #{hypernetwork_forward.1} parent=43 // pred_check_branch
          %1120 = sbr.rel (%p1118) target = $region48
        $region47: #{hypernetwork_forward.1} parent=43 // pred_region
          %s1121 = smul.u32 32, %s18
          %s1122 = ssub.s32 39, %s1121
          %p1123 = scmp.lt.s32.totalorder %s1122, 32
          %s1124 = scalar_select %p1123, %s1122, 32
          %s1125 = smul.u32 128, %s1124
          %p1126 = scmp.ne.s32.totalorder 0, %s1125
          %s1127 = smul.addr %s1121, 8
          %s1128 = scalar_lea.vmem %s6, %s1127
          // Predicated region
          $region49: #{hypernetwork_forward.1} parent=47 // pred_check
            %p1129 = pneg %p1126
          $region50: #{hypernetwork_forward.1} parent=47 // pred_check_branch
            %1131 = sbr.rel (%p1129) target = $region52
          $region51: #{hypernetwork_forward.1} parent=47 // pred_region
            // Predicated region
            $region53: #{hypernetwork_forward.1} parent=51 // pred_check
              _
            $region54: #{hypernetwork_forward.1} parent=51 // pred_check_branch
              %1133 = sbr.rel (0) target = $region56
            $region55: #{hypernetwork_forward.1} parent=51 // pred_region
              // Predicated region
              $region75: #{hypernetwork_forward.1} parent=55 // pred_check
                _
              $region76: #{hypernetwork_forward.1} parent=55 // pred_check_branch
                %1244 = sbr.rel (0) target = $region78
              $region77: #{hypernetwork_forward.1} parent=55 // pred_region
                %s1245 = sshrl.u32 %s1124, 5
                // While loop
                $region79: #{hypernetwork_forward.1} parent=77 // loop_pre_header
                  _
                $region80: #{hypernetwork_forward.1} parent=77 // loop_header
                  %s1247 = sphi 0, %s1249
                  %p1248 = scmp.ge.s32.totalorder %s1247, %s1245
                  %s1252 = sphi 0, %s1321
                  %s1253 = sphi %s1117, %s1324
                  %s1254 = sphi %s1128, %s1325
                $region81: #{hypernetwork_forward.1} parent=77 // loop_header_branch
                  %1251 = sbr.rel (%p1248) target = $region85
                $region82: #{hypernetwork_forward.1} parent=77 // loop_body
                  %v1255 = vld [vmem:[%s1253] sm:$0xff]
                  %1256 = vst [vmem:[%s1254] sm:$0xff] %v1255
                  %v1257 = vld [vmem:[%s1253 + $0x8] sm:$0xff]
                  %1258 = vst [vmem:[%s1254 + $0x8] sm:$0xff] %v1257
                  %v1259 = vld [vmem:[%s1253 + $0x10] sm:$0xff]
                  %1260 = vst [vmem:[%s1254 + $0x10] sm:$0xff] %v1259
                  %v1261 = vld [vmem:[%s1253 + $0x18] sm:$0xff]
                  %1262 = vst [vmem:[%s1254 + $0x18] sm:$0xff] %v1261
                  %v1263 = vld [vmem:[%s1253 + $0x20] sm:$0xff]
                  %1264 = vst [vmem:[%s1254 + $0x20] sm:$0xff] %v1263
                  %v1265 = vld [vmem:[%s1253 + $0x28] sm:$0xff]
                  %1266 = vst [vmem:[%s1254 + $0x28] sm:$0xff] %v1265
                  %v1267 = vld [vmem:[%s1253 + $0x30] sm:$0xff]
                  %1268 = vst [vmem:[%s1254 + $0x30] sm:$0xff] %v1267
                  %v1269 = vld [vmem:[%s1253 + $0x38] sm:$0xff]
                  %1270 = vst [vmem:[%s1254 + $0x38] sm:$0xff] %v1269
                  %v1271 = vld [vmem:[%s1253 + $0x40] sm:$0xff]
                  %1272 = vst [vmem:[%s1254 + $0x40] sm:$0xff] %v1271
                  %v1273 = vld [vmem:[%s1253 + $0x48] sm:$0xff]
                  %1274 = vst [vmem:[%s1254 + $0x48] sm:$0xff] %v1273
                  %v1275 = vld [vmem:[%s1253 + $0x50] sm:$0xff]
                  %1276 = vst [vmem:[%s1254 + $0x50] sm:$0xff] %v1275
                  %v1277 = vld [vmem:[%s1253 + $0x58] sm:$0xff]
                  %1278 = vst [vmem:[%s1254 + $0x58] sm:$0xff] %v1277
                  %v1279 = vld [vmem:[%s1253 + $0x60] sm:$0xff]
                  %1280 = vst [vmem:[%s1254 + $0x60] sm:$0xff] %v1279
                  %v1281 = vld [vmem:[%s1253 + $0x68] sm:$0xff]
                  %1282 = vst [vmem:[%s1254 + $0x68] sm:$0xff] %v1281
                  %v1283 = vld [vmem:[%s1253 + $0x70] sm:$0xff]
                  %1284 = vst [vmem:[%s1254 + $0x70] sm:$0xff] %v1283
                  %v1285 = vld [vmem:[%s1253 + $0x78] sm:$0xff]
                  %1286 = vst [vmem:[%s1254 + $0x78] sm:$0xff] %v1285
                  %v1287 = vld [vmem:[%s1253 + $0x80] sm:$0xff]
                  %1288 = vst [vmem:[%s1254 + $0x80] sm:$0xff] %v1287
                  %v1289 = vld [vmem:[%s1253 + $0x88] sm:$0xff]
                  %1290 = vst [vmem:[%s1254 + $0x88] sm:$0xff] %v1289
                  %v1291 = vld [vmem:[%s1253 + $0x90] sm:$0xff]
                  %1292 = vst [vmem:[%s1254 + $0x90] sm:$0xff] %v1291
                  %v1293 = vld [vmem:[%s1253 + $0x98] sm:$0xff]
                  %1294 = vst [vmem:[%s1254 + $0x98] sm:$0xff] %v1293
                  %v1295 = vld [vmem:[%s1253 + $0xa0] sm:$0xff]
                  %1296 = vst [vmem:[%s1254 + $0xa0] sm:$0xff] %v1295
                  %v1297 = vld [vmem:[%s1253 + $0xa8] sm:$0xff]
                  %1298 = vst [vmem:[%s1254 + $0xa8] sm:$0xff] %v1297
                  %v1299 = vld [vmem:[%s1253 + $0xb0] sm:$0xff]
                  %1300 = vst [vmem:[%s1254 + $0xb0] sm:$0xff] %v1299
                  %v1301 = vld [vmem:[%s1253 + $0xb8] sm:$0xff]
                  %1302 = vst [vmem:[%s1254 + $0xb8] sm:$0xff] %v1301
                  %v1303 = vld [vmem:[%s1253 + $0xc0] sm:$0xff]
                  %1304 = vst [vmem:[%s1254 + $0xc0] sm:$0xff] %v1303
                  %v1305 = vld [vmem:[%s1253 + $0xc8] sm:$0xff]
                  %1306 = vst [vmem:[%s1254 + $0xc8] sm:$0xff] %v1305
                  %v1307 = vld [vmem:[%s1253 + $0xd0] sm:$0xff]
                  %1308 = vst [vmem:[%s1254 + $0xd0] sm:$0xff] %v1307
                  %v1309 = vld [vmem:[%s1253 + $0xd8] sm:$0xff]
                  %1310 = vst [vmem:[%s1254 + $0xd8] sm:$0xff] %v1309
                  %v1311 = vld [vmem:[%s1253 + $0xe0] sm:$0xff]
                  %1312 = vst [vmem:[%s1254 + $0xe0] sm:$0xff] %v1311
                  %v1313 = vld [vmem:[%s1253 + $0xe8] sm:$0xff]
                  %1314 = vst [vmem:[%s1254 + $0xe8] sm:$0xff] %v1313
                  %v1315 = vld [vmem:[%s1253 + $0xf0] sm:$0xff]
                  %1316 = vst [vmem:[%s1254 + $0xf0] sm:$0xff] %v1315
                  %v1317 = vld [vmem:[%s1253 + $0xf8] sm:$0xff]
                  %1318 = vst [vmem:[%s1254 + $0xf8] sm:$0xff] %v1317
                  %s1319 = sadd.s32 1, %s1252
                  %p1320 = scmp.ge.s32.totalorder %s1319, %s1245
                  %s1321 = scalar_select %p1320, 0, %s1319
                  %s1322 = smul.u32 %s1321, 256
                  %s1323 = smul.u32 %s1321, 256
                  %s1324 = scalar_lea.vmem %s1117, %s1322 [#allocation3]
                  %s1325 = scalar_lea.vmem %s1128, %s1323
                $region83: #{hypernetwork_forward.1} parent=77 // loop_footer
                  %s1249 = sadd.s32 %s1247, 1
                $region84: #{hypernetwork_forward.1} parent=77 // loop_footer_branch
                  %1246 = sbr.rel target = $region80
                $region85: #{hypernetwork_forward.1} parent=77 // loop_exit
                  _
                %s1326 = sshrl.u32 %s1124, 5
                %s1327 = sand.u32 %s1124, 31
                %s1328 = smul.u32 %s1326, 32
                %s1329 = smul.u32 8, %s1328
                %s1330 = scalar_lea.vmem %s1117, %s1329 [#allocation3]
                %s1331 = smul.u32 8, %s1328
                %s1332 = scalar_lea.vmem %s1128, %s1331
                // While loop
                $region86: #{hypernetwork_forward.1} parent=77 // loop_pre_header
                  _
                $region87: #{hypernetwork_forward.1} parent=77 // loop_header
                  %s1334 = sphi 0, %s1336
                  %p1335 = scmp.ge.s32.totalorder %s1334, %s1327
                  %s1339 = sphi 0, %s1346
                  %s1340 = sphi %s1330, %s1349
                  %s1341 = sphi %s1332, %s1350
                $region88: #{hypernetwork_forward.1} parent=77 // loop_header_branch
                  %1338 = sbr.rel (%p1335) target = $region92
                $region89: #{hypernetwork_forward.1} parent=77 // loop_body
                  %v1342 = vld [vmem:[%s1340] sm:$0xff]
                  %1343 = vst [vmem:[%s1341] sm:$0xff] %v1342
                  %s1344 = sadd.s32 1, %s1339
                  %p1345 = scmp.ge.s32.totalorder %s1344, %s1327
                  %s1346 = scalar_select %p1345, 0, %s1344
                  %s1347 = smul.u32 %s1346, 8
                  %s1348 = smul.u32 %s1346, 8
                  %s1349 = scalar_lea.vmem %s1330, %s1347 [#allocation3]
                  %s1350 = scalar_lea.vmem %s1332, %s1348
                $region90: #{hypernetwork_forward.1} parent=77 // loop_footer
                  %s1336 = sadd.s32 %s1334, 1
                $region91: #{hypernetwork_forward.1} parent=77 // loop_footer_branch
                  %1333 = sbr.rel target = $region87
                $region92: #{hypernetwork_forward.1} parent=77 // loop_exit
                  _
              $region78: #{hypernetwork_forward.1} parent=55 // pred_fallthru
                _
              // Predicated region
              $region93: #{hypernetwork_forward.1} parent=55 // pred_check
                _
              $region94: #{hypernetwork_forward.1} parent=55 // pred_check_branch
                %1352 = sbr.rel target = $region96
              $region95: #{hypernetwork_forward.1} parent=55 // pred_region
                _
              $region96: #{hypernetwork_forward.1} parent=55 // pred_fallthru
                _
            $region56: #{hypernetwork_forward.1} parent=51 // pred_fallthru
              _
            // Predicated region
            $region57: #{hypernetwork_forward.1} parent=51 // pred_check
              _
            $region58: #{hypernetwork_forward.1} parent=51 // pred_check_branch
              %1135 = sbr.rel target = $region60
            $region59: #{hypernetwork_forward.1} parent=51 // pred_region
              %s1137 = sshrl.u32 %s1124, 5
              // While loop
              $region61: #{hypernetwork_forward.1} parent=59 // loop_pre_header
                _
              $region62: #{hypernetwork_forward.1} parent=59 // loop_header
                %s1139 = sphi 0, %s1141
                %p1140 = scmp.ge.s32.totalorder %s1139, %s1137
                %s1144 = sphi 0, %s1213
                %s1145 = sphi %s1117, %s1216
                %s1146 = sphi %s1128, %s1217
              $region63: #{hypernetwork_forward.1} parent=59 // loop_header_branch
                %1143 = sbr.rel (%p1140) target = $region67
              $region64: #{hypernetwork_forward.1} parent=59 // loop_body
                %v1147 = vld [vmem:[%s1145] sm:$0xff]
                %1148 = vst [vmem:[%s1146] sm:$0xff] %v1147
                %v1149 = vld [vmem:[%s1145 + $0x8] sm:$0xff]
                %1150 = vst [vmem:[%s1146 + $0x8] sm:$0xff] %v1149
                %v1151 = vld [vmem:[%s1145 + $0x10] sm:$0xff]
                %1152 = vst [vmem:[%s1146 + $0x10] sm:$0xff] %v1151
                %v1153 = vld [vmem:[%s1145 + $0x18] sm:$0xff]
                %1154 = vst [vmem:[%s1146 + $0x18] sm:$0xff] %v1153
                %v1155 = vld [vmem:[%s1145 + $0x20] sm:$0xff]
                %1156 = vst [vmem:[%s1146 + $0x20] sm:$0xff] %v1155
                %v1157 = vld [vmem:[%s1145 + $0x28] sm:$0xff]
                %1158 = vst [vmem:[%s1146 + $0x28] sm:$0xff] %v1157
                %v1159 = vld [vmem:[%s1145 + $0x30] sm:$0xff]
                %1160 = vst [vmem:[%s1146 + $0x30] sm:$0xff] %v1159
                %v1161 = vld [vmem:[%s1145 + $0x38] sm:$0xff]
                %1162 = vst [vmem:[%s1146 + $0x38] sm:$0xff] %v1161
                %v1163 = vld [vmem:[%s1145 + $0x40] sm:$0xff]
                %1164 = vst [vmem:[%s1146 + $0x40] sm:$0xff] %v1163
                %v1165 = vld [vmem:[%s1145 + $0x48] sm:$0xff]
                %1166 = vst [vmem:[%s1146 + $0x48] sm:$0xff] %v1165
                %v1167 = vld [vmem:[%s1145 + $0x50] sm:$0xff]
                %1168 = vst [vmem:[%s1146 + $0x50] sm:$0xff] %v1167
                %v1169 = vld [vmem:[%s1145 + $0x58] sm:$0xff]
                %1170 = vst [vmem:[%s1146 + $0x58] sm:$0xff] %v1169
                %v1171 = vld [vmem:[%s1145 + $0x60] sm:$0xff]
                %1172 = vst [vmem:[%s1146 + $0x60] sm:$0xff] %v1171
                %v1173 = vld [vmem:[%s1145 + $0x68] sm:$0xff]
                %1174 = vst [vmem:[%s1146 + $0x68] sm:$0xff] %v1173
                %v1175 = vld [vmem:[%s1145 + $0x70] sm:$0xff]
                %1176 = vst [vmem:[%s1146 + $0x70] sm:$0xff] %v1175
                %v1177 = vld [vmem:[%s1145 + $0x78] sm:$0xff]
                %1178 = vst [vmem:[%s1146 + $0x78] sm:$0xff] %v1177
                %v1179 = vld [vmem:[%s1145 + $0x80] sm:$0xff]
                %1180 = vst [vmem:[%s1146 + $0x80] sm:$0xff] %v1179
                %v1181 = vld [vmem:[%s1145 + $0x88] sm:$0xff]
                %1182 = vst [vmem:[%s1146 + $0x88] sm:$0xff] %v1181
                %v1183 = vld [vmem:[%s1145 + $0x90] sm:$0xff]
                %1184 = vst [vmem:[%s1146 + $0x90] sm:$0xff] %v1183
                %v1185 = vld [vmem:[%s1145 + $0x98] sm:$0xff]
                %1186 = vst [vmem:[%s1146 + $0x98] sm:$0xff] %v1185
                %v1187 = vld [vmem:[%s1145 + $0xa0] sm:$0xff]
                %1188 = vst [vmem:[%s1146 + $0xa0] sm:$0xff] %v1187
                %v1189 = vld [vmem:[%s1145 + $0xa8] sm:$0xff]
                %1190 = vst [vmem:[%s1146 + $0xa8] sm:$0xff] %v1189
                %v1191 = vld [vmem:[%s1145 + $0xb0] sm:$0xff]
                %1192 = vst [vmem:[%s1146 + $0xb0] sm:$0xff] %v1191
                %v1193 = vld [vmem:[%s1145 + $0xb8] sm:$0xff]
                %1194 = vst [vmem:[%s1146 + $0xb8] sm:$0xff] %v1193
                %v1195 = vld [vmem:[%s1145 + $0xc0] sm:$0xff]
                %1196 = vst [vmem:[%s1146 + $0xc0] sm:$0xff] %v1195
                %v1197 = vld [vmem:[%s1145 + $0xc8] sm:$0xff]
                %1198 = vst [vmem:[%s1146 + $0xc8] sm:$0xff] %v1197
                %v1199 = vld [vmem:[%s1145 + $0xd0] sm:$0xff]
                %1200 = vst [vmem:[%s1146 + $0xd0] sm:$0xff] %v1199
                %v1201 = vld [vmem:[%s1145 + $0xd8] sm:$0xff]
                %1202 = vst [vmem:[%s1146 + $0xd8] sm:$0xff] %v1201
                %v1203 = vld [vmem:[%s1145 + $0xe0] sm:$0xff]
                %1204 = vst [vmem:[%s1146 + $0xe0] sm:$0xff] %v1203
                %v1205 = vld [vmem:[%s1145 + $0xe8] sm:$0xff]
                %1206 = vst [vmem:[%s1146 + $0xe8] sm:$0xff] %v1205
                %v1207 = vld [vmem:[%s1145 + $0xf0] sm:$0xff]
                %1208 = vst [vmem:[%s1146 + $0xf0] sm:$0xff] %v1207
                %v1209 = vld [vmem:[%s1145 + $0xf8] sm:$0xff]
                %1210 = vst [vmem:[%s1146 + $0xf8] sm:$0xff] %v1209
                %s1211 = sadd.s32 1, %s1144
                %p1212 = scmp.ge.s32.totalorder %s1211, %s1137
                %s1213 = scalar_select %p1212, 0, %s1211
                %s1214 = smul.u32 %s1213, 256
                %s1215 = smul.u32 %s1213, 256
                %s1216 = scalar_lea.vmem %s1117, %s1214 [#allocation3]
                %s1217 = scalar_lea.vmem %s1128, %s1215
              $region65: #{hypernetwork_forward.1} parent=59 // loop_footer
                %s1141 = sadd.s32 %s1139, 1
              $region66: #{hypernetwork_forward.1} parent=59 // loop_footer_branch
                %1138 = sbr.rel target = $region62
              $region67: #{hypernetwork_forward.1} parent=59 // loop_exit
                _
              %s1218 = sshrl.u32 %s1124, 5
              %s1219 = sand.u32 %s1124, 31
              %s1220 = smul.u32 %s1218, 32
              %s1221 = smul.u32 8, %s1220
              %s1222 = scalar_lea.vmem %s1117, %s1221 [#allocation3]
              %s1223 = smul.u32 8, %s1220
              %s1224 = scalar_lea.vmem %s1128, %s1223
              // While loop
              $region68: #{hypernetwork_forward.1} parent=59 // loop_pre_header
                _
              $region69: #{hypernetwork_forward.1} parent=59 // loop_header
                %s1226 = sphi 0, %s1228
                %p1227 = scmp.ge.s32.totalorder %s1226, %s1219
                %s1231 = sphi 0, %s1238
                %s1232 = sphi %s1222, %s1241
                %s1233 = sphi %s1224, %s1242
              $region70: #{hypernetwork_forward.1} parent=59 // loop_header_branch
                %1230 = sbr.rel (%p1227) target = $region74
              $region71: #{hypernetwork_forward.1} parent=59 // loop_body
                %v1234 = vld [vmem:[%s1232] sm:$0xff]
                %1235 = vst [vmem:[%s1233] sm:$0xff] %v1234
                %s1236 = sadd.s32 1, %s1231
                %p1237 = scmp.ge.s32.totalorder %s1236, %s1219
                %s1238 = scalar_select %p1237, 0, %s1236
                %s1239 = smul.u32 %s1238, 8
                %s1240 = smul.u32 %s1238, 8
                %s1241 = scalar_lea.vmem %s1222, %s1239 [#allocation3]
                %s1242 = scalar_lea.vmem %s1224, %s1240
              $region72: #{hypernetwork_forward.1} parent=59 // loop_footer
                %s1228 = sadd.s32 %s1226, 1
              $region73: #{hypernetwork_forward.1} parent=59 // loop_footer_branch
                %1225 = sbr.rel target = $region69
              $region74: #{hypernetwork_forward.1} parent=59 // loop_exit
                _
            $region60: #{hypernetwork_forward.1} parent=51 // pred_fallthru
              _
          $region52: #{hypernetwork_forward.1} parent=47 // pred_fallthru
            _
          %1353 = vnop
        $region48: #{hypernetwork_forward.1} parent=43 // pred_fallthru
          _
      $region44: #{hypernetwork_forward.1} parent=5 // pred_fallthru
        _
      %p1354 = scmp.le.s32.totalorder 2, %s13
      // Predicated region
      $region97: #{hypernetwork_forward.1} parent=5 // pred_check
        %p1355 = pneg %p1354
      $region98: #{hypernetwork_forward.1} parent=5 // pred_check_branch
        %1357 = sbr.rel (%p1355) target = $region100
      $region99: #{hypernetwork_forward.1} parent=5 // pred_region
        %s1358 = ssub.s32 %s13, 2
        // Predicated region
        $region101: #{hypernetwork_forward.1} parent=99 // pred_check
          %p1359 = pneg %p173
        $region102: #{hypernetwork_forward.1} parent=99 // pred_check_branch
          %1361 = sbr.rel (%p1359) target = $region104
        $region103: #{hypernetwork_forward.1} parent=99 // pred_region
          %s1362 = sand.u32 %s158, 1
          %s1363 = sand.u32 %s158, 1
          %s1364 = smul.addr %s1363, 256
          %s1365 = scalar_lea.vmem [#allocation3], %s1364
        $region104: #{hypernetwork_forward.1} parent=99 // pred_fallthru
          _
      $region100: #{hypernetwork_forward.1} parent=5 // pred_fallthru
        _
    $region6: #{hypernetwork_forward.1} parent=1 // loop_footer
      %s17 = sadd.s32 1, %s13
    $region7: #{hypernetwork_forward.1} parent=1 // loop_footer_branch
      %12 = sbr.rel target = $region3
    $region8: #{hypernetwork_forward.1} parent=1 // loop_exit
      _

</llo_original>
